<compile_context>
chip_gen: v7x
topology: tpu7x:2x2x1
jax: 0.10.0
libtpu: 0.0.40
codegen_flags: <defaults>
</compile_context>

<pallas_src>
import functools
import math

import jax
import jax.numpy as jnp
from jax.experimental import pallas as pl
from jax.experimental.pallas import tpu as pltpu

_VMEM_LIMIT = 32 * 1024 * 1024          # <= scoped default on v6e/v7x, raises v5e's 16 MiB
_BLOCK_BUDGET_BYTES = 2 * 1024 * 1024   # per-block working-set target (double-buffered
                                        # in+out stays well under the scoped limit)


def _compiler_params(n_grid_axes=1):
    return pltpu.CompilerParams(
        dimension_semantics=("parallel",) * n_grid_axes,
        vmem_limit_bytes=_VMEM_LIMIT,
    )


def _pick_row_tile(n_rows, bytes_per_row):
    """Largest row tile (multiple of 8) whose block fits the VMEM budget.

    If the whole problem fits in one block we use the full row count (a block
    equal to the full array dim is always layout-legal), so no host-side
    padding copy is ever needed.  Otherwise the tile is a multiple of 8 and the
    ragged last block is masked by Pallas.
    """
    tile = max(8, (_BLOCK_BUDGET_BYTES // max(bytes_per_row, 1)) // 8 * 8)
    if n_rows <= tile:
        return n_rows
    return tile


# --------------------------------------------------------------------------- #
# LayerNorm (torch-style: unbiased std, eps added to std)
# --------------------------------------------------------------------------- #
def _layernorm_kernel(x_ref, a_ref, b_ref, o_ref, *, eps):
    x = x_ref[...].astype(jnp.float32)                      # (tm, F)
    n = x.shape[-1]
    mean = jnp.mean(x, axis=-1, keepdims=True)
    xc = x - mean
    var = jnp.sum(xc * xc, axis=-1, keepdims=True) * jnp.float32(1.0 / (n - 1))
    inv = pl.reciprocal(jnp.sqrt(var) + jnp.float32(eps), approx=True)   # EUP, ~free
    a = a_ref[...].astype(jnp.float32)
    b = b_ref[...].astype(jnp.float32)
    o_ref[...] = (xc * (a * inv) + b).astype(o_ref.dtype)


def layer_norm(x, a_2, b_2, eps=1e-6):
    orig_shape = x.shape
    F = orig_shape[-1]
    x2 = x.reshape(-1, F)
    R = x2.shape[0]
    tm = _pick_row_tile(R, 2 * F * 4)          # f32 in + out per row
    grid = (pl.cdiv(R, tm),)
    out = pl.pallas_call(
        functools.partial(_layernorm_kernel, eps=eps),
        out_shape=jax.ShapeDtypeStruct((R, F), x.dtype),
        grid_spec=pltpu.PrefetchScalarGridSpec(
            num_scalar_prefetch=0,
            grid=grid,
            in_specs=[
                pl.BlockSpec((tm, F), lambda i: (i, 0)),
                pl.BlockSpec((1, F), lambda i: (0, 0)),
                pl.BlockSpec((1, F), lambda i: (0, 0)),
            ],
            out_specs=pl.BlockSpec((tm, F), lambda i: (i, 0)),
        ),
        compiler_params=_compiler_params(1),
    )(x2, a_2.reshape(1, F), b_2.reshape(1, F))
    return out.reshape(orig_shape)


# --------------------------------------------------------------------------- #
# Linear (x @ W + b), optionally with the residual add fused in
# --------------------------------------------------------------------------- #
def _linear_kernel(x_ref, w_ref, b_ref, o_ref):
    acc = jnp.dot(x_ref[...], w_ref[...], preferred_element_type=jnp.float32)
    o_ref[...] = (acc + b_ref[...].astype(jnp.float32)).astype(o_ref.dtype)


def _linear_res_kernel(x_ref, w_ref, b_ref, r_ref, o_ref):
    acc = jnp.dot(x_ref[...], w_ref[...], preferred_element_type=jnp.float32)
    acc = acc + b_ref[...].astype(jnp.float32) + r_ref[...].astype(jnp.float32)
    o_ref[...] = acc.astype(o_ref.dtype)


def linear(x2, w, b, residual=None):
    """x2: (R, K); w: (K, N) (already transposed from torch's (N, K)); b: (N,)."""
    R, K = x2.shape
    N = w.shape[1]
    bytes_per_row = (K + 2 * N + (N if residual is not None else 0)) * 4
    tm = _pick_row_tile(R, bytes_per_row)
    grid = (pl.cdiv(R, tm),)
    b2 = b.reshape(1, N)
    if residual is None:
        kernel = _linear_kernel
        in_specs = [
            pl.BlockSpec((tm, K), lambda i: (i, 0)),
            pl.BlockSpec((K, N), lambda i: (0, 0)),
            pl.BlockSpec((1, N), lambda i: (0, 0)),
        ]
        args = (x2, w, b2)
    else:
        kernel = _linear_res_kernel
        in_specs = [
            pl.BlockSpec((tm, K), lambda i: (i, 0)),
            pl.BlockSpec((K, N), lambda i: (0, 0)),
            pl.BlockSpec((1, N), lambda i: (0, 0)),
            pl.BlockSpec((tm, N), lambda i: (i, 0)),
        ]
        args = (x2, w, b2, residual)
    return pl.pallas_call(
        kernel,
        out_shape=jax.ShapeDtypeStruct((R, N), x2.dtype),
        grid_spec=pltpu.PrefetchScalarGridSpec(
            num_scalar_prefetch=0,
            grid=grid,
            in_specs=in_specs,
            out_specs=pl.BlockSpec((tm, N), lambda i: (i, 0)),
        ),
        compiler_params=_compiler_params(1),
    )(*args)


# --------------------------------------------------------------------------- #
# Per-head attention core: softmax(q k^T / sqrt(d_k)) v   (no mask in this model)
# --------------------------------------------------------------------------- #
def _attention_kernel(q_ref, k_ref, v_ref, o_ref, *, scale):
    q = q_ref[0].astype(jnp.float32)            # (S, dk)
    k = k_ref[0].astype(jnp.float32)
    v = v_ref[0].astype(jnp.float32)
    s = jax.lax.dot_general(q, k, (((1,), (1,)), ((), ())),
                            preferred_element_type=jnp.float32) * jnp.float32(scale)
    m = jnp.max(s, axis=-1, keepdims=True)
    p = jnp.exp(s - m)
    denom = jnp.sum(p, axis=-1, keepdims=True)
    p = p * pl.reciprocal(denom, approx=True)   # EUP reciprocal instead of divide
    o = jnp.dot(p, v, preferred_element_type=jnp.float32)
    o_ref[0] = o.astype(o_ref.dtype)


def attention_core(qh, kh, vh, d_k):
    """qh/kh/vh: (B*H, S, d_k)."""
    BH, S, dk = qh.shape
    return pl.pallas_call(
        functools.partial(_attention_kernel, scale=1.0 / math.sqrt(d_k)),
        out_shape=jax.ShapeDtypeStruct((BH, S, dk), qh.dtype),
        grid_spec=pltpu.PrefetchScalarGridSpec(
            num_scalar_prefetch=0,
            grid=(BH,),
            in_specs=[
                pl.BlockSpec((1, S, dk), lambda i: (i, 0, 0)),
                pl.BlockSpec((1, S, dk), lambda i: (i, 0, 0)),
                pl.BlockSpec((1, S, dk), lambda i: (i, 0, 0)),
            ],
            out_specs=pl.BlockSpec((1, S, dk), lambda i: (i, 0, 0)),
        ),
        compiler_params=_compiler_params(1),
    )(qh, kh, vh)


# --------------------------------------------------------------------------- #
# Fused position-wise FFN: residual + relu(x W1 + b1) W2 + b2
# --------------------------------------------------------------------------- #
def _ffn_kernel(x_ref, w1_ref, b1_ref, w2_ref, b2_ref, r_ref, o_ref):
    x = x_ref[...].astype(jnp.float32)
    h = jnp.dot(x, w1_ref[...], preferred_element_type=jnp.float32)
    h = jnp.maximum(h + b1_ref[...].astype(jnp.float32), 0.0)
    y = jnp.dot(h, w2_ref[...], preferred_element_type=jnp.float32)
    y = y + b2_ref[...].astype(jnp.float32) + r_ref[...].astype(jnp.float32)
    o_ref[...] = y.astype(o_ref.dtype)


def feed_forward(x2, w1, b1, w2, b2, residual):
    R, D = x2.shape
    Dff = w1.shape[1]
    bytes_per_row = (D + Dff + 2 * D) * 4
    tm = _pick_row_tile(R, bytes_per_row)
    grid = (pl.cdiv(R, tm),)
    return pl.pallas_call(
        _ffn_kernel,
        out_shape=jax.ShapeDtypeStruct((R, D), x2.dtype),
        grid_spec=pltpu.PrefetchScalarGridSpec(
            num_scalar_prefetch=0,
            grid=grid,
            in_specs=[
                pl.BlockSpec((tm, D), lambda i: (i, 0)),
                pl.BlockSpec((D, Dff), lambda i: (0, 0)),
                pl.BlockSpec((1, Dff), lambda i: (0, 0)),
                pl.BlockSpec((Dff, D), lambda i: (0, 0)),
                pl.BlockSpec((1, D), lambda i: (0, 0)),
                pl.BlockSpec((tm, D), lambda i: (i, 0)),
            ],
            out_specs=pl.BlockSpec((tm, D), lambda i: (i, 0)),
        ),
        compiler_params=_compiler_params(1),
    )(x2, w1, b1.reshape(1, Dff), w2, b2.reshape(1, D), residual)


# --------------------------------------------------------------------------- #
# Model wrappers
# --------------------------------------------------------------------------- #
def attn_block_forward(x, p, n_head, eps=1e-6):
    B, S, D = x.shape
    d_k = D // n_head
    x2 = x.reshape(-1, D)

    # sublayer 0: x + MHA(norm1(x), x, x)   (key/value use the *un-normed* x, per spec)
    nx = layer_norm(x, p["ln1_a"], p["ln1_b"], eps).reshape(-1, D)
    q = linear(nx, p["wq"], p["bq"])
    k = linear(x2, p["wk"], p["bk"])
    v = linear(x2, p["wv"], p["bv"])

    def split_heads(t):
        return (t.reshape(B, S, n_head, d_k)
                 .transpose(0, 2, 1, 3)
                 .reshape(B * n_head, S, d_k))

    a = attention_core(split_heads(q), split_heads(k), split_heads(v), d_k)
    a = (a.reshape(B, n_head, S, d_k)
          .transpose(0, 2, 1, 3)
          .reshape(B * S, D))
    x1 = linear(a, p["wo"], p["bo"], residual=x2)           # residual fused in-kernel

    # sublayer 1: x + FFN(norm2(x))
    nx1 = layer_norm(x1.reshape(B, S, D), p["ln2_a"], p["ln2_b"], eps).reshape(-1, D)
    out = feed_forward(nx1, p["w1"], p["b1"], p["w2"], p["b2"], residual=x1)
    return out.reshape(B, S, D)


def text_attention_forward(x, params, n_head):
    # NOTE: the torch module's trailing self.norm is never applied in forward(); match it.
    for p in params:
        x = attn_block_forward(x, p, n_head)
    return x


# --------------------------------------------------------------------------- #
# Params, pure-JAX reference, and self-check
# --------------------------------------------------------------------------- #
def init_params(key, dim, dim_ff, n_head, n_block):
    params = []
    for _ in range(n_block):
        key, *ks = jax.random.split(key, 13)

        def w(k, fan_in, fan_out):
            return (jax.random.normal(k, (fan_in, fan_out), jnp.float32)
                    / jnp.sqrt(jnp.float32(fan_in)))

        params.append({
            "wq": w(ks[0], dim, dim), "bq": 0.01 * jax.random.normal(ks[6], (dim,), jnp.float32),
            "wk": w(ks[1], dim, dim), "bk": 0.01 * jax.random.normal(ks[7], (dim,), jnp.float32),
            "wv": w(ks[2], dim, dim), "bv": 0.01 * jax.random.normal(ks[8], (dim,), jnp.float32),
            "wo": w(ks[3], dim, dim), "bo": 0.01 * jax.random.normal(ks[9], (dim,), jnp.float32),
            "w1": w(ks[4], dim, dim_ff), "b1": 0.01 * jax.random.normal(ks[10], (dim_ff,), jnp.float32),
            "w2": w(ks[5], dim_ff, dim), "b2": 0.01 * jax.random.normal(ks[11], (dim,), jnp.float32),
            "ln1_a": jnp.ones((dim,), jnp.float32), "ln1_b": jnp.zeros((dim,), jnp.float32),
            "ln2_a": jnp.ones((dim,), jnp.float32), "ln2_b": jnp.zeros((dim,), jnp.float32),
        })
    return params


def _ref_layer_norm(x, a, b, eps=1e-6):
    mean = jnp.mean(x, axis=-1, keepdims=True)
    std = jnp.sqrt(jnp.sum((x - mean) ** 2, axis=-1, keepdims=True) / (x.shape[-1] - 1))
    return a * (x - mean) / (std + eps) + b


def ref_text_attention(x, params, n_head):
    B, S, D = x.shape
    d_k = D // n_head
    for p in params:
        nx = _ref_layer_norm(x, p["ln1_a"], p["ln1_b"])
        q = nx @ p["wq"] + p["bq"]
        k = x @ p["wk"] + p["bk"]
        v = x @ p["wv"] + p["bv"]

        def heads(t):
            return t.reshape(B, S, n_head, d_k).transpose(0, 2, 1, 3)

        qh, kh, vh = heads(q), heads(k), heads(v)
        s = jnp.einsum("bhqd,bhkd->bhqk", qh, kh) / math.sqrt(d_k)
        pw = jax.nn.softmax(s, axis=-1)
        a = jnp.einsum("bhqk,bhkd->bhqd", pw, vh)
        a = a.transpose(0, 2, 1, 3).reshape(B, S, D)
        x = x + (a @ p["wo"] + p["bo"])
        nx1 = _ref_layer_norm(x, p["ln2_a"], p["ln2_b"])
        h = jax.nn.relu(nx1 @ p["w1"] + p["b1"])
        x = x + (h @ p["w2"] + p["b2"])
    return x


if __name__ == "__main__":
    batch, seq, dim, dim_ff, n_head, n_block = 2, 8, 32, 64, 4, 4
    key = jax.random.PRNGKey(0)
    kx, kp = jax.random.split(key)
    x = jax.random.normal(kx, (batch, seq, dim), dtype=jnp.float32)
    params = init_params(kp, dim, dim_ff, n_head, n_block)

    fwd = jax.jit(text_attention_forward, static_argnums=(2,))
    y = jax.block_until_ready(fwd(x, params, n_head))

    ref = ref_text_attention(x, params, n_head)
    assert y.shape == x.shape and y.dtype == x.dtype
    assert not bool(jnp.any(jnp.isnan(y)))
    # Tolerance accounts for the EUP approx-reciprocal in LayerNorm/softmax.
    assert jnp.allclose(y, ref, atol=3e-2, rtol=3e-2), "mismatch vs pure-JAX reference"
    print("KERNEL_OK")
</pallas_src>

<mosaic_0001>
module attributes {stable_mosaic.version = 11 : i64} {
  func.func @_linear_kernel(%arg0: i32, %arg1: memref<16x32xf32, #tpu.memory_space<vmem>>, %arg2: memref<32x32xf32, #tpu.memory_space<vmem>>, %arg3: memref<1x32xf32, #tpu.memory_space<vmem>>, %arg4: memref<16x32xf32, #tpu.memory_space<vmem>>) attributes {dimension_semantics = [#tpu.dimension_semantics<parallel>], iteration_bounds = array<i64: 1>, scalar_prefetch = 0 : i64, scratch_operands = 0 : i64, tpu.core_type = #tpu.core_type<tc>, window_params = [{transform_indices = @transform_0, window_bounds = array<i64: 16, 32>}, {pipeline_mode = #tpu.pipeline_mode<synchronous>, transform_indices = @transform_1, window_bounds = array<i64: 32, 32>}, {pipeline_mode = #tpu.pipeline_mode<synchronous>, transform_indices = @transform_2, window_bounds = array<i64: 1, 32>}, {transform_indices = @transform_3, window_bounds = array<i64: 16, 32>}]} {
    %c0 = arith.constant 0 : index
    %c0_0 = arith.constant 0 : index
    %0 = vector.load %arg1[%c0, %c0_0] : memref<16x32xf32, #tpu.memory_space<vmem>>, vector<16x32xf32>
    %c0_1 = arith.constant 0 : index
    %c0_2 = arith.constant 0 : index
    %1 = vector.load %arg2[%c0_1, %c0_2] : memref<32x32xf32, #tpu.memory_space<vmem>>, vector<32x32xf32>
    %cst = arith.constant dense<0.000000e+00> : vector<16x32xf32>
    %2 = tpu.matmul %0, %1, %cst {dimension_numbers = #tpu.dot_dimension_numbers<[1], [0], [0], [1], [0, 0, 1, 1], [], []>} : vector<16x32xf32>, vector<32x32xf32>, vector<16x32xf32> -> vector<16x32xf32>
    %c0_3 = arith.constant 0 : index
    %c0_4 = arith.constant 0 : index
    %3 = vector.load %arg3[%c0_3, %c0_4] : memref<1x32xf32, #tpu.memory_space<vmem>>, vector<1x32xf32>
    %4 = vector.broadcast %3 : vector<1x32xf32> to vector<16x32xf32>
    %5 = arith.addf %2, %4 : vector<16x32xf32>
    %c0_5 = arith.constant 0 : index
    %c0_6 = arith.constant 0 : index
    %6 = vector.load %arg4[%c0_5, %c0_6] : memref<16x32xf32, #tpu.memory_space<vmem>>, vector<16x32xf32>
    tpu.vector_store %arg4[%c0_5, %c0_6], %5 {strides = array<i32>} : memref<16x32xf32, #tpu.memory_space<vmem>>, vector<16x32xf32>,
    return
  }
  func.func @transform_0(%arg0: i32) -> (i32, i32) {
    %c0_i32 = arith.constant 0 : i32
    %c0_i32_0 = arith.constant 0 : i32
    return %arg0, %c0_i32 : i32, i32
  }
  func.func @transform_1(%arg0: i32) -> (i32, i32) {
    %c0_i32 = arith.constant 0 : i32
    %c0_i32_0 = arith.constant 0 : i32
    %c0_i32_1 = arith.constant 0 : i32
    return %c0_i32, %c0_i32_0 : i32, i32
  }
  func.func @transform_2(%arg0: i32) -> (i32, i32) {
    %c0_i32 = arith.constant 0 : i32
    %c0_i32_0 = arith.constant 0 : i32
    %c0_i32_1 = arith.constant 0 : i32
    return %c0_i32, %c0_i32_0 : i32, i32
  }
  func.func @transform_3(%arg0: i32) -> (i32, i32) {
    %c0_i32 = arith.constant 0 : i32
    %c0_i32_0 = arith.constant 0 : i32
    return %arg0, %c0_i32 : i32, i32
  }
}

module attributes {stable_mosaic.version = 11 : i64} {
  func.func @_layernorm_kernel(%arg0: i32, %arg1: memref<16x32xf32, #tpu.memory_space<vmem>>, %arg2: memref<1x32xf32, #tpu.memory_space<vmem>>, %arg3: memref<1x32xf32, #tpu.memory_space<vmem>>, %arg4: memref<16x32xf32, #tpu.memory_space<vmem>>) attributes {dimension_semantics = [#tpu.dimension_semantics<parallel>], iteration_bounds = array<i64: 1>, scalar_prefetch = 0 : i64, scratch_operands = 0 : i64, tpu.core_type = #tpu.core_type<tc>, window_params = [{transform_indices = @transform_0, window_bounds = array<i64: 16, 32>}, {pipeline_mode = #tpu.pipeline_mode<synchronous>, transform_indices = @transform_1, window_bounds = array<i64: 1, 32>}, {pipeline_mode = #tpu.pipeline_mode<synchronous>, transform_indices = @transform_2, window_bounds = array<i64: 1, 32>}, {transform_indices = @transform_3, window_bounds = array<i64: 16, 32>}]} {
    %c0 = arith.constant 0 : index
    %c0_0 = arith.constant 0 : index
    %0 = vector.load %arg1[%c0, %c0_0] : memref<16x32xf32, #tpu.memory_space<vmem>>, vector<16x32xf32>
    %cst = arith.constant dense<0.000000e+00> : vector<16xf32>
    %1 = vector.multi_reduction <add>, %0, %cst [1] : vector<16x32xf32> to vector<16xf32>
    %2 = vector.shape_cast %1 : vector<16xf32> to vector<16x1xf32>
    %cst_1 = arith.constant 3.200000e+01 : f32
    %3 = vector.broadcast %cst_1 : f32 to vector<16x1xf32>
    %4 = arith.divf %2, %3 : vector<16x1xf32>
    %5 = vector.broadcast %4 : vector<16x1xf32> to vector<16x32xf32>
    %6 = arith.subf %0, %5 : vector<16x32xf32>
    %7 = arith.mulf %6, %6 : vector<16x32xf32>
    %cst_2 = arith.constant dense<0.000000e+00> : vector<16xf32>
    %8 = vector.multi_reduction <add>, %7, %cst_2 [1] : vector<16x32xf32> to vector<16xf32>
    %9 = vector.shape_cast %8 : vector<16xf32> to vector<16x1xf32>
    %cst_3 = arith.constant 0.0322580636 : f32
    %10 = vector.broadcast %cst_3 : f32 to vector<16x1xf32>
    %11 = arith.mulf %9, %10 : vector<16x1xf32>
    %12 = math.sqrt %11 : vector<16x1xf32>
    %cst_4 = arith.constant 9.99999997E-7 : f32
    %13 = vector.broadcast %cst_4 : f32 to vector<16x1xf32>
    %14 = arith.addf %12, %13 : vector<16x1xf32>
    %15 = tpu.reciprocal %14 {approx = true} : vector<16x1xf32> -> vector<16x1xf32>
    %c0_5 = arith.constant 0 : index
    %c0_6 = arith.constant 0 : index
    %16 = vector.load %arg2[%c0_5, %c0_6] : memref<1x32xf32, #tpu.memory_space<vmem>>, vector<1x32xf32>
    %c0_7 = arith.constant 0 : index
    %c0_8 = arith.constant 0 : index
    %17 = vector.load %arg3[%c0_7, %c0_8] : memref<1x32xf32, #tpu.memory_space<vmem>>, vector<1x32xf32>
    %18 = vector.broadcast %16 : vector<1x32xf32> to vector<16x32xf32>
    %19 = vector.broadcast %15 : vector<16x1xf32> to vector<16x32xf32>
    %20 = arith.mulf %18, %19 : vector<16x32xf32>
    %21 = arith.mulf %6, %20 : vector<16x32xf32>
    %22 = vector.broadcast %17 : vector<1x32xf32> to vector<16x32xf32>
    %23 = arith.addf %21, %22 : vector<16x32xf32>
    %c0_9 = arith.constant 0 : index
    %c0_10 = arith.constant 0 : index
    %24 = vector.load %arg4[%c0_9, %c0_10] : memref<16x32xf32, #tpu.memory_space<vmem>>, vector<16x32xf32>
    tpu.vector_store %arg4[%c0_9, %c0_10], %23 {strides = array<i32>} : memref<16x32xf32, #tpu.memory_space<vmem>>, vector<16x32xf32>,
    return
  }
  func.func @transform_0(%arg0: i32) -> (i32, i32) {
    %c0_i32 = arith.constant 0 : i32
    %c0_i32_0 = arith.constant 0 : i32
    return %arg0, %c0_i32 : i32, i32
  }
  func.func @transform_1(%arg0: i32) -> (i32, i32) {
    %c0_i32 = arith.constant 0 : i32
    %c0_i32_0 = arith.constant 0 : i32
    %c0_i32_1 = arith.constant 0 : i32
    return %c0_i32, %c0_i32_0 : i32, i32
  }
  func.func @transform_2(%arg0: i32) -> (i32, i32) {
    %c0_i32 = arith.constant 0 : i32
    %c0_i32_0 = arith.constant 0 : i32
    %c0_i32_1 = arith.constant 0 : i32
    return %c0_i32, %c0_i32_0 : i32, i32
  }
  func.func @transform_3(%arg0: i32) -> (i32, i32) {
    %c0_i32 = arith.constant 0 : i32
    %c0_i32_0 = arith.constant 0 : i32
    return %arg0, %c0_i32 : i32, i32
  }
}

module attributes {stable_mosaic.version = 11 : i64} {
  func.func @_attention_kernel(%arg0: i32, %arg1: memref<1x8x8xf32, #tpu.memory_space<vmem>>, %arg2: memref<1x8x8xf32, #tpu.memory_space<vmem>>, %arg3: memref<1x8x8xf32, #tpu.memory_space<vmem>>, %arg4: memref<1x8x8xf32, #tpu.memory_space<vmem>>) attributes {dimension_semantics = [#tpu.dimension_semantics<parallel>], iteration_bounds = array<i64: 8>, scalar_prefetch = 0 : i64, scratch_operands = 0 : i64, tpu.core_type = #tpu.core_type<tc>, window_params = [{transform_indices = @transform_0, window_bounds = array<i64: 1, 8, 8>}, {transform_indices = @transform_1, window_bounds = array<i64: 1, 8, 8>}, {transform_indices = @transform_2, window_bounds = array<i64: 1, 8, 8>}, {transform_indices = @transform_3, window_bounds = array<i64: 1, 8, 8>}]} {
    %c0 = arith.constant 0 : index
    %c0_0 = arith.constant 0 : index
    %c0_1 = arith.constant 0 : index
    %0 = vector.load %arg1[%c0, %c0_0, %c0_1] : memref<1x8x8xf32, #tpu.memory_space<vmem>>, vector<1x8x8xf32>
    %1 = vector.shape_cast %0 : vector<1x8x8xf32> to vector<8x8xf32>
    %c0_2 = arith.constant 0 : index
    %c0_3 = arith.constant 0 : index
    %c0_4 = arith.constant 0 : index
    %2 = vector.load %arg2[%c0_2, %c0_3, %c0_4] : memref<1x8x8xf32, #tpu.memory_space<vmem>>, vector<1x8x8xf32>
    %3 = vector.shape_cast %2 : vector<1x8x8xf32> to vector<8x8xf32>
    %c0_5 = arith.constant 0 : index
    %c0_6 = arith.constant 0 : index
    %c0_7 = arith.constant 0 : index
    %4 = vector.load %arg3[%c0_5, %c0_6, %c0_7] : memref<1x8x8xf32, #tpu.memory_space<vmem>>, vector<1x8x8xf32>
    %5 = vector.shape_cast %4 : vector<1x8x8xf32> to vector<8x8xf32>
    %cst = arith.constant dense<0.000000e+00> : vector<8x8xf32>
    %6 = tpu.matmul %1, %3, %cst {dimension_numbers = #tpu.dot_dimension_numbers<[1], [1], [0], [0], [0, 0, 1, 0], [], []>} : vector<8x8xf32>, vector<8x8xf32>, vector<8x8xf32> -> vector<8x8xf32>
    %cst_8 = arith.constant 0.353553385 : f32
    %7 = vector.broadcast %cst_8 : f32 to vector<8x8xf32>
    %8 = arith.mulf %6, %7 : vector<8x8xf32>
    %cst_9 = arith.constant dense<0xFF800000> : vector<8xf32>
    %9 = vector.multi_reduction <maximumf>, %8, %cst_9 [1] : vector<8x8xf32> to vector<8xf32>
    %10 = vector.shape_cast %9 : vector<8xf32> to vector<8x1xf32>
    %11 = vector.broadcast %10 : vector<8x1xf32> to vector<8x8xf32>
    %12 = arith.subf %8, %11 : vector<8x8xf32>
    %13 = math.exp %12 : vector<8x8xf32>
    %cst_10 = arith.constant dense<0.000000e+00> : vector<8xf32>
    %14 = vector.multi_reduction <add>, %13, %cst_10 [1] : vector<8x8xf32> to vector<8xf32>
    %15 = vector.shape_cast %14 : vector<8xf32> to vector<8x1xf32>
    %16 = tpu.reciprocal %15 {approx = true} : vector<8x1xf32> -> vector<8x1xf32>
    %17 = vector.broadcast %16 : vector<8x1xf32> to vector<8x8xf32>
    %18 = arith.mulf %13, %17 : vector<8x8xf32>
    %cst_11 = arith.constant dense<0.000000e+00> : vector<8x8xf32>
    %19 = tpu.matmul %18, %5, %cst_11 {dimension_numbers = #tpu.dot_dimension_numbers<[1], [0], [0], [1], [0, 0, 1, 1], [], []>} : vector<8x8xf32>, vector<8x8xf32>, vector<8x8xf32> -> vector<8x8xf32>
    %c0_12 = arith.constant 0 : index
    %c0_13 = arith.constant 0 : index
    %c0_14 = arith.constant 0 : index
    %20 = vector.load %arg4[%c0_12, %c0_13, %c0_14] : memref<1x8x8xf32, #tpu.memory_space<vmem>>, vector<1x8x8xf32>
    %21 = vector.shape_cast %20 : vector<1x8x8xf32> to vector<8x8xf32>
    %22 = vector.shape_cast %19 : vector<8x8xf32> to vector<1x8x8xf32>
    tpu.vector_store %arg4[%c0_12, %c0_13, %c0_14], %22 {strides = array<i32>} : memref<1x8x8xf32, #tpu.memory_space<vmem>>, vector<1x8x8xf32>,
    return
  }
  func.func @transform_0(%arg0: i32) -> (i32, i32, i32) {
    %c0_i32 = arith.constant 0 : i32
    %c0_i32_0 = arith.constant 0 : i32
    %c0_i32_1 = arith.constant 0 : i32
    return %arg0, %c0_i32, %c0_i32_0 : i32, i32, i32
  }
  func.func @transform_1(%arg0: i32) -> (i32, i32, i32) {
    %c0_i32 = arith.constant 0 : i32
    %c0_i32_0 = arith.constant 0 : i32
    %c0_i32_1 = arith.constant 0 : i32
    return %arg0, %c0_i32, %c0_i32_0 : i32, i32, i32
  }
  func.func @transform_2(%arg0: i32) -> (i32, i32, i32) {
    %c0_i32 = arith.constant 0 : i32
    %c0_i32_0 = arith.constant 0 : i32
    %c0_i32_1 = arith.constant 0 : i32
    return %arg0, %c0_i32, %c0_i32_0 : i32, i32, i32
  }
  func.func @transform_3(%arg0: i32) -> (i32, i32, i32) {
    %c0_i32 = arith.constant 0 : i32
    %c0_i32_0 = arith.constant 0 : i32
    %c0_i32_1 = arith.constant 0 : i32
    return %arg0, %c0_i32, %c0_i32_0 : i32, i32, i32
  }
}

module attributes {stable_mosaic.version = 11 : i64} {
  func.func @_ffn_kernel(%arg0: i32, %arg1: memref<16x32xf32, #tpu.memory_space<vmem>>, %arg2: memref<32x64xf32, #tpu.memory_space<vmem>>, %arg3: memref<1x64xf32, #tpu.memory_space<vmem>>, %arg4: memref<64x32xf32, #tpu.memory_space<vmem>>, %arg5: memref<1x32xf32, #tpu.memory_space<vmem>>, %arg6: memref<16x32xf32, #tpu.memory_space<vmem>>, %arg7: memref<16x32xf32, #tpu.memory_space<vmem>>) attributes {dimension_semantics = [#tpu.dimension_semantics<parallel>], iteration_bounds = array<i64: 1>, scalar_prefetch = 0 : i64, scratch_operands = 0 : i64, tpu.core_type = #tpu.core_type<tc>, window_params = [{transform_indices = @transform_0, window_bounds = array<i64: 16, 32>}, {pipeline_mode = #tpu.pipeline_mode<synchronous>, transform_indices = @transform_1, window_bounds = array<i64: 32, 64>}, {pipeline_mode = #tpu.pipeline_mode<synchronous>, transform_indices = @transform_2, window_bounds = array<i64: 1, 64>}, {pipeline_mode = #tpu.pipeline_mode<synchronous>, transform_indices = @transform_3, window_bounds = array<i64: 64, 32>}, {pipeline_mode = #tpu.pipeline_mode<synchronous>, transform_indices = @transform_4, window_bounds = array<i64: 1, 32>}, {transform_indices = @transform_5, window_bounds = array<i64: 16, 32>}, {transform_indices = @transform_6, window_bounds = array<i64: 16, 32>}]} {
    %c0 = arith.constant 0 : index
    %c0_0 = arith.constant 0 : index
    %0 = vector.load %arg1[%c0, %c0_0] : memref<16x32xf32, #tpu.memory_space<vmem>>, vector<16x32xf32>
    %c0_1 = arith.constant 0 : index
    %c0_2 = arith.constant 0 : index
    %1 = vector.load %arg2[%c0_1, %c0_2] : memref<32x64xf32, #tpu.memory_space<vmem>>, vector<32x64xf32>
    %cst = arith.constant dense<0.000000e+00> : vector<16x64xf32>
    %2 = tpu.matmul %0, %1, %cst {dimension_numbers = #tpu.dot_dimension_numbers<[1], [0], [0], [1], [0, 0, 1, 1], [], []>} : vector<16x32xf32>, vector<32x64xf32>, vector<16x64xf32> -> vector<16x64xf32>
    %c0_3 = arith.constant 0 : index
    %c0_4 = arith.constant 0 : index
    %3 = vector.load %arg3[%c0_3, %c0_4] : memref<1x64xf32, #tpu.memory_space<vmem>>, vector<1x64xf32>
    %4 = vector.broadcast %3 : vector<1x64xf32> to vector<16x64xf32>
    %5 = arith.addf %2, %4 : vector<16x64xf32>
    %cst_5 = arith.constant 0.000000e+00 : f32
    %6 = vector.broadcast %cst_5 : f32 to vector<16x64xf32>
    %7 = arith.maximumf %5, %6 : vector<16x64xf32>
    %c0_6 = arith.constant 0 : index
    %c0_7 = arith.constant 0 : index
    %8 = vector.load %arg4[%c0_6, %c0_7] : memref<64x32xf32, #tpu.memory_space<vmem>>, vector<64x32xf32>
    %cst_8 = arith.constant dense<0.000000e+00> : vector<16x32xf32>
    %9 = tpu.matmul %7, %8, %cst_8 {dimension_numbers = #tpu.dot_dimension_numbers<[1], [0], [0], [1], [0, 0, 1, 1], [], []>} : vector<16x64xf32>, vector<64x32xf32>, vector<16x32xf32> -> vector<16x32xf32>
    %c0_9 = arith.constant 0 : index
    %c0_10 = arith.constant 0 : index
    %10 = vector.load %arg5[%c0_9, %c0_10] : memref<1x32xf32, #tpu.memory_space<vmem>>, vector<1x32xf32>
    %11 = vector.broadcast %10 : vector<1x32xf32> to vector<16x32xf32>
    %12 = arith.addf %9, %11 : vector<16x32xf32>
    %c0_11 = arith.constant 0 : index
    %c0_12 = arith.constant 0 : index
    %13 = vector.load %arg6[%c0_11, %c0_12] : memref<16x32xf32, #tpu.memory_space<vmem>>, vector<16x32xf32>
    %14 = arith.addf %12, %13 : vector<16x32xf32>
    %c0_13 = arith.constant 0 : index
    %c0_14 = arith.constant 0 : index
    %15 = vector.load %arg7[%c0_13, %c0_14] : memref<16x32xf32, #tpu.memory_space<vmem>>, vector<16x32xf32>
    tpu.vector_store %arg7[%c0_13, %c0_14], %14 {strides = array<i32>} : memref<16x32xf32, #tpu.memory_space<vmem>>, vector<16x32xf32>,
    return
  }
  func.func @transform_0(%arg0: i32) -> (i32, i32) {
    %c0_i32 = arith.constant 0 : i32
    %c0_i32_0 = arith.constant 0 : i32
    return %arg0, %c0_i32 : i32, i32
  }
  func.func @transform_1(%arg0: i32) -> (i32, i32) {
    %c0_i32 = arith.constant 0 : i32
    %c0_i32_0 = arith.constant 0 : i32
    %c0_i32_1 = arith.constant 0 : i32
    return %c0_i32, %c0_i32_0 : i32, i32
  }
  func.func @transform_2(%arg0: i32) -> (i32, i32) {
    %c0_i32 = arith.constant 0 : i32
    %c0_i32_0 = arith.constant 0 : i32
    %c0_i32_1 = arith.constant 0 : i32
    return %c0_i32, %c0_i32_0 : i32, i32
  }
  func.func @transform_3(%arg0: i32) -> (i32, i32) {
    %c0_i32 = arith.constant 0 : i32
    %c0_i32_0 = arith.constant 0 : i32
    %c0_i32_1 = arith.constant 0 : i32
    return %c0_i32, %c0_i32_0 : i32, i32
  }
  func.func @transform_4(%arg0: i32) -> (i32, i32) {
    %c0_i32 = arith.constant 0 : i32
    %c0_i32_0 = arith.constant 0 : i32
    %c0_i32_1 = arith.constant 0 : i32
    return %c0_i32, %c0_i32_0 : i32, i32
  }
  func.func @transform_5(%arg0: i32) -> (i32, i32) {
    %c0_i32 = arith.constant 0 : i32
    %c0_i32_0 = arith.constant 0 : i32
    return %arg0, %c0_i32 : i32, i32
  }
  func.func @transform_6(%arg0: i32) -> (i32, i32) {
    %c0_i32 = arith.constant 0 : i32
    %c0_i32_0 = arith.constant 0 : i32
    return %arg0, %c0_i32 : i32, i32
  }
}

module attributes {stable_mosaic.version = 11 : i64} {
  func.func @_linear_res_kernel(%arg0: i32, %arg1: memref<16x32xf32, #tpu.memory_space<vmem>>, %arg2: memref<32x32xf32, #tpu.memory_space<vmem>>, %arg3: memref<1x32xf32, #tpu.memory_space<vmem>>, %arg4: memref<16x32xf32, #tpu.memory_space<vmem>>, %arg5: memref<16x32xf32, #tpu.memory_space<vmem>>) attributes {dimension_semantics = [#tpu.dimension_semantics<parallel>], iteration_bounds = array<i64: 1>, scalar_prefetch = 0 : i64, scratch_operands = 0 : i64, tpu.core_type = #tpu.core_type<tc>, window_params = [{transform_indices = @transform_0, window_bounds = array<i64: 16, 32>}, {pipeline_mode = #tpu.pipeline_mode<synchronous>, transform_indices = @transform_1, window_bounds = array<i64: 32, 32>}, {pipeline_mode = #tpu.pipeline_mode<synchronous>, transform_indices = @transform_2, window_bounds = array<i64: 1, 32>}, {transform_indices = @transform_3, window_bounds = array<i64: 16, 32>}, {transform_indices = @transform_4, window_bounds = array<i64: 16, 32>}]} {
    %c0 = arith.constant 0 : index
    %c0_0 = arith.constant 0 : index
    %0 = vector.load %arg1[%c0, %c0_0] : memref<16x32xf32, #tpu.memory_space<vmem>>, vector<16x32xf32>
    %c0_1 = arith.constant 0 : index
    %c0_2 = arith.constant 0 : index
    %1 = vector.load %arg2[%c0_1, %c0_2] : memref<32x32xf32, #tpu.memory_space<vmem>>, vector<32x32xf32>
    %cst = arith.constant dense<0.000000e+00> : vector<16x32xf32>
    %2 = tpu.matmul %0, %1, %cst {dimension_numbers = #tpu.dot_dimension_numbers<[1], [0], [0], [1], [0, 0, 1, 1], [], []>} : vector<16x32xf32>, vector<32x32xf32>, vector<16x32xf32> -> vector<16x32xf32>
    %c0_3 = arith.constant 0 : index
    %c0_4 = arith.constant 0 : index
    %3 = vector.load %arg3[%c0_3, %c0_4] : memref<1x32xf32, #tpu.memory_space<vmem>>, vector<1x32xf32>
    %4 = vector.broadcast %3 : vector<1x32xf32> to vector<16x32xf32>
    %5 = arith.addf %2, %4 : vector<16x32xf32>
    %c0_5 = arith.constant 0 : index
    %c0_6 = arith.constant 0 : index
    %6 = vector.load %arg4[%c0_5, %c0_6] : memref<16x32xf32, #tpu.memory_space<vmem>>, vector<16x32xf32>
    %7 = arith.addf %5, %6 : vector<16x32xf32>
    %c0_7 = arith.constant 0 : index
    %c0_8 = arith.constant 0 : index
    %8 = vector.load %arg5[%c0_7, %c0_8] : memref<16x32xf32, #tpu.memory_space<vmem>>, vector<16x32xf32>
    tpu.vector_store %arg5[%c0_7, %c0_8], %7 {strides = array<i32>} : memref<16x32xf32, #tpu.memory_space<vmem>>, vector<16x32xf32>,
    return
  }
  func.func @transform_0(%arg0: i32) -> (i32, i32) {
    %c0_i32 = arith.constant 0 : i32
    %c0_i32_0 = arith.constant 0 : i32
    return %arg0, %c0_i32 : i32, i32
  }
  func.func @transform_1(%arg0: i32) -> (i32, i32) {
    %c0_i32 = arith.constant 0 : i32
    %c0_i32_0 = arith.constant 0 : i32
    %c0_i32_1 = arith.constant 0 : i32
    return %c0_i32, %c0_i32_0 : i32, i32
  }
  func.func @transform_2(%arg0: i32) -> (i32, i32) {
    %c0_i32 = arith.constant 0 : i32
    %c0_i32_0 = arith.constant 0 : i32
    %c0_i32_1 = arith.constant 0 : i32
    return %c0_i32, %c0_i32_0 : i32, i32
  }
  func.func @transform_3(%arg0: i32) -> (i32, i32) {
    %c0_i32 = arith.constant 0 : i32
    %c0_i32_0 = arith.constant 0 : i32
    return %arg0, %c0_i32 : i32, i32
  }
  func.func @transform_4(%arg0: i32) -> (i32, i32) {
    %c0_i32 = arith.constant 0 : i32
    %c0_i32_0 = arith.constant 0 : i32
    return %arg0, %c0_i32 : i32, i32
  }
}

module attributes {stable_mosaic.version = 11 : i64} {
  func.func @_ffn_kernel(%arg0: i32, %arg1: memref<16x32xf32, #tpu.memory_space<vmem>>, %arg2: memref<32x64xf32, #tpu.memory_space<vmem>>, %arg3: memref<1x64xf32, #tpu.memory_space<vmem>>, %arg4: memref<64x32xf32, #tpu.memory_space<vmem>>, %arg5: memref<1x32xf32, #tpu.memory_space<vmem>>, %arg6: memref<16x32xf32, #tpu.memory_space<vmem>>, %arg7: memref<16x32xf32, #tpu.memory_space<vmem>>) attributes {dimension_semantics = [#tpu.dimension_semantics<parallel>], iteration_bounds = array<i64: 1>, scalar_prefetch = 0 : i64, scratch_operands = 0 : i64, tpu.core_type = #tpu.core_type<tc>, window_params = [{transform_indices = @transform_0, window_bounds = array<i64: 16, 32>}, {pipeline_mode = #tpu.pipeline_mode<synchronous>, transform_indices = @transform_1, window_bounds = array<i64: 32, 64>}, {pipeline_mode = #tpu.pipeline_mode<synchronous>, transform_indices = @transform_2, window_bounds = array<i64: 1, 64>}, {pipeline_mode = #tpu.pipeline_mode<synchronous>, transform_indices = @transform_3, window_bounds = array<i64: 64, 32>}, {pipeline_mode = #tpu.pipeline_mode<synchronous>, transform_indices = @transform_4, window_bounds = array<i64: 1, 32>}, {transform_indices = @transform_5, window_bounds = array<i64: 16, 32>}, {transform_indices = @transform_6, window_bounds = array<i64: 16, 32>}]} {
    %c0 = arith.constant 0 : index
    %c0_0 = arith.constant 0 : index
    %0 = vector.load %arg1[%c0, %c0_0] : memref<16x32xf32, #tpu.memory_space<vmem>>, vector<16x32xf32>
    %c0_1 = arith.constant 0 : index
    %c0_2 = arith.constant 0 : index
    %1 = vector.load %arg2[%c0_1, %c0_2] : memref<32x64xf32, #tpu.memory_space<vmem>>, vector<32x64xf32>
    %cst = arith.constant dense<0.000000e+00> : vector<16x64xf32>
    %2 = tpu.matmul %0, %1, %cst {dimension_numbers = #tpu.dot_dimension_numbers<[1], [0], [0], [1], [0, 0, 1, 1], [], []>} : vector<16x32xf32>, vector<32x64xf32>, vector<16x64xf32> -> vector<16x64xf32>
    %c0_3 = arith.constant 0 : index
    %c0_4 = arith.constant 0 : index
    %3 = vector.load %arg3[%c0_3, %c0_4] : memref<1x64xf32, #tpu.memory_space<vmem>>, vector<1x64xf32>
    %4 = vector.broadcast %3 : vector<1x64xf32> to vector<16x64xf32>
    %5 = arith.addf %2, %4 : vector<16x64xf32>
    %cst_5 = arith.constant 0.000000e+00 : f32
    %6 = vector.broadcast %cst_5 : f32 to vector<16x64xf32>
    %7 = arith.maximumf %5, %6 : vector<16x64xf32>
    %c0_6 = arith.constant 0 : index
    %c0_7 = arith.constant 0 : index
    %8 = vector.load %arg4[%c0_6, %c0_7] : memref<64x32xf32, #tpu.memory_space<vmem>>, vector<64x32xf32>
    %cst_8 = arith.constant dense<0.000000e+00> : vector<16x32xf32>
    %9 = tpu.matmul %7, %8, %cst_8 {dimension_numbers = #tpu.dot_dimension_numbers<[1], [0], [0], [1], [0, 0, 1, 1], [], []>} : vector<16x64xf32>, vector<64x32xf32>, vector<16x32xf32> -> vector<16x32xf32>
    %c0_9 = arith.constant 0 : index
    %c0_10 = arith.constant 0 : index
    %10 = vector.load %arg5[%c0_9, %c0_10] : memref<1x32xf32, #tpu.memory_space<vmem>>, vector<1x32xf32>
    %11 = vector.broadcast %10 : vector<1x32xf32> to vector<16x32xf32>
    %12 = arith.addf %9, %11 : vector<16x32xf32>
    %c0_11 = arith.constant 0 : index
    %c0_12 = arith.constant 0 : index
    %13 = vector.load %arg6[%c0_11, %c0_12] : memref<16x32xf32, #tpu.memory_space<vmem>>, vector<16x32xf32>
    %14 = arith.addf %12, %13 : vector<16x32xf32>
    %c0_13 = arith.constant 0 : index
    %c0_14 = arith.constant 0 : index
    %15 = vector.load %arg7[%c0_13, %c0_14] : memref<16x32xf32, #tpu.memory_space<vmem>>, vector<16x32xf32>
    tpu.vector_store %arg7[%c0_13, %c0_14], %14 {strides = array<i32>} : memref<16x32xf32, #tpu.memory_space<vmem>>, vector<16x32xf32>,
    return
  }
  func.func @transform_0(%arg0: i32) -> (i32, i32) {
    %c0_i32 = arith.constant 0 : i32
    %c0_i32_0 = arith.constant 0 : i32
    return %arg0, %c0_i32 : i32, i32
  }
  func.func @transform_1(%arg0: i32) -> (i32, i32) {
    %c0_i32 = arith.constant 0 : i32
    %c0_i32_0 = arith.constant 0 : i32
    %c0_i32_1 = arith.constant 0 : i32
    return %c0_i32, %c0_i32_0 : i32, i32
  }
  func.func @transform_2(%arg0: i32) -> (i32, i32) {
    %c0_i32 = arith.constant 0 : i32
    %c0_i32_0 = arith.constant 0 : i32
    %c0_i32_1 = arith.constant 0 : i32
    return %c0_i32, %c0_i32_0 : i32, i32
  }
  func.func @transform_3(%arg0: i32) -> (i32, i32) {
    %c0_i32 = arith.constant 0 : i32
    %c0_i32_0 = arith.constant 0 : i32
    %c0_i32_1 = arith.constant 0 : i32
    return %c0_i32, %c0_i32_0 : i32, i32
  }
  func.func @transform_4(%arg0: i32) -> (i32, i32) {
    %c0_i32 = arith.constant 0 : i32
    %c0_i32_0 = arith.constant 0 : i32
    %c0_i32_1 = arith.constant 0 : i32
    return %c0_i32, %c0_i32_0 : i32, i32
  }
  func.func @transform_5(%arg0: i32) -> (i32, i32) {
    %c0_i32 = arith.constant 0 : i32
    %c0_i32_0 = arith.constant 0 : i32
    return %arg0, %c0_i32 : i32, i32
  }
  func.func @transform_6(%arg0: i32) -> (i32, i32) {
    %c0_i32 = arith.constant 0 : i32
    %c0_i32_0 = arith.constant 0 : i32
    return %arg0, %c0_i32 : i32, i32
  }
}

</mosaic_0001>

<llo_original>
// kernel: text_attention_forward.35
$region0: #{text_attention_forward.35}
  #allocation0 [shape = 'u32[]', space=smem, size = 0x4, offset = 0x4, fixed_abs, tag = 'smem constant byte address 0x4 - core index']
  #allocation1 [shape = 'u32[144,128]{1,0:T(1,128)}', space=vmem, size = 0x12000, scoped, tag = 'internal scratch']
  %s0 = inlined_call_operand.vmem [shape: f32[16,32], index: 0, kind: input, shape index: {}]
  %s1 = inlined_call_operand.vmem [shape: f32[32,32], index: 1, kind: input, shape index: {}]
  %s2 = inlined_call_operand.vmem [shape: f32[1,32], index: 2, kind: input, shape index: {}]
  %s3 = inlined_call_operand.vmem [shape: f32[16,32], index: 3, kind: output, shape index: {}]
  %s4 = sld [smem:[#allocation0]]
  $region22: #{text_attention_forward.35} parent=0
    _
  %s6 = ssub.s32 1, %s4
  %s7 = scalar_select 0, %s6, %s4
  // Predicated region
  $region2: #{text_attention_forward.35} parent=0 // pred_check
    _
  $region3: #{text_attention_forward.35} parent=0 // pred_check_branch
    %9 = sbr.rel (0) target = $region5
  $region4: #{text_attention_forward.35} parent=0 // pred_region
    _
  $region5: #{text_attention_forward.35} parent=0 // pred_fallthru
    _
  // Predicated region
  $region6: #{text_attention_forward.35} parent=0 // pred_check
    _
  $region7: #{text_attention_forward.35} parent=0 // pred_check_branch
    %11 = sbr.rel (0) target = $region9
  $region8: #{text_attention_forward.35} parent=0 // pred_region
    _
  $region9: #{text_attention_forward.35} parent=0 // pred_fallthru
    _
  // Predicated region
  $region10: #{text_attention_forward.35} parent=0 // pred_check
    _
  $region11: #{text_attention_forward.35} parent=0 // pred_check_branch
    %13 = sbr.rel (0) target = $region13
  $region12: #{text_attention_forward.35} parent=0 // pred_region
    _
  $region13: #{text_attention_forward.35} parent=0 // pred_fallthru
    _
  %v14 = vld [vmem:[%s0] sm:$0xff]
  %v15 = vld [vmem:[%s0 + $0x8] sm:$0xff]
  %v16 = vld [vmem:[%s1] sm:$0xff]
  %v17 = vld [vmem:[%s1 + $0x8] sm:$0xff]
  %v18 = vld [vmem:[%s1 + $0x10] sm:$0xff]
  %v19 = vld [vmem:[%s1 + $0x18] sm:$0xff]
  %v20 = vld [vmem:[%s2] sm:$0x1]
  %v22 = vlaneseq
  %v23 = vshrl.u32 %v22, 7
  %v24 = vsub.s32 0, %v23
  %v25 = vrot.slane %v20, %v24
  %vm27 = vcmask 261120
  %v29 = vsel %vm27, %v14, 0
  %v32 = vsel %vm27, %v15, 0
  %34 = vmatprep.subr.mxu0 0.0
  %35 = vmatpush1.msra.mxu0 %v16
  %36 = vmatprep.subr.mxu0 0.0
  %37 = vmatpush1.msra.mxu0 %v17
  %38 = vmatprep.subr.mxu0 0.0
  %39 = vmatpush1.msra.mxu0 %v18
  %40 = vmatprep.subr.mxu0 0.0
  %41 = vmatpush1.msra.mxu0 %v19
  %42 = vmatprep.subr.mxu0 0.0
  %43 = vmatpush1.msra.mxu0 0.0
  %44 = vmatprep.subr.mxu0 0.0
  %45 = vmatpush1.msra.mxu0 0.0
  %46 = vmatprep.subr.mxu0 0.0
  %47 = vmatpush1.msra.mxu0 0.0
  %48 = vmatprep.subr.mxu0 0.0
  %49 = vmatpush1.msra.mxu0 0.0
  %50 = vmatprep.subr.mxu0 0.0
  %51 = vmatpush1.msra.mxu0 0.0
  %52 = vmatprep.subr.mxu0 0.0
  %53 = vmatpush1.msra.mxu0 0.0
  %54 = vmatprep.subr.mxu0 0.0
  %55 = vmatpush1.msra.mxu0 0.0
  %56 = vmatprep.subr.mxu0 0.0
  %57 = vmatpush1.msra.mxu0 0.0
  %58 = vmatprep.subr.mxu0 0.0
  %59 = vmatpush1.msra.mxu0 0.0
  %60 = vmatprep.subr.mxu0 0.0
  %61 = vmatpush1.msra.mxu0 0.0
  %62 = vmatprep.subr.mxu0 0.0
  %63 = vmatpush1.msra.mxu0 0.0
  %64 = vmatprep.subr.mxu0 0.0
  %65 = vmatpush1.msra.mxu0 0.0
  %66 = vmatprep.subr.mxu0 0.0
  %67 = vmatpush1.msra.mxu0 0.0
  %68 = vmatprep.subr.mxu0 0.0
  %69 = vmatpush1.msra.mxu0 0.0
  %70 = vmatprep.subr.mxu0 0.0
  %71 = vmatpush1.msra.mxu0 0.0
  %72 = vmatprep.subr.mxu0 0.0
  %73 = vmatpush1.msra.mxu0 0.0
  %74 = vmatprep.subr.mxu0 0.0
  %75 = vmatpush1.msra.mxu0 0.0
  %76 = vmatprep.subr.mxu0 0.0
  %77 = vmatpush1.msra.mxu0 0.0
  %78 = vmatprep.subr.mxu0 0.0
  %79 = vmatpush1.msra.mxu0 0.0
  %80 = vmatprep.subr.mxu0 0.0
  %81 = vmatpush1.msra.mxu0 0.0
  %82 = vmatprep.subr.mxu0 0.0
  %83 = vmatpush1.msra.mxu0 0.0
  %84 = vmatprep.subr.mxu0 0.0
  %85 = vmatpush1.msra.mxu0 0.0
  %86 = vmatprep.subr.mxu0 0.0
  %87 = vmatpush1.msra.mxu0 0.0
  %88 = vmatprep.subr.mxu0 0.0
  %89 = vmatpush1.msra.mxu0 0.0
  %90 = vmatprep.subr.mxu0 0.0
  %91 = vmatpush1.msra.mxu0 0.0
  %92 = vmatprep.subr.mxu0 0.0
  %93 = vmatpush1.msra.mxu0 0.0
  %94 = vmatprep.subr.mxu0 0.0
  %95 = vmatpush1.msra.mxu0 0.0
  %96 = vmatprep.subr.mxu0 0.0
  %97 = vmatpush1.msra.mxu0 0.0
  %98 = vmatprep.mubr.f32.mxu0 0.0
  %99 = vmatmul.mubr.f32.gmra.mrb[0].mxu0 %v29
  %v100 = vpop.f32.mrb[0].mxu0
  %v101 = vadd.f32 %v25, %v100
  %v102 = vpop.f32.mrb[0].mxu0
  %103 = vmatprep.mubr.f32.mxu0 0.0
  %104 = vmatmul.mubr.f32.gmra.mrb[0].mxu0 %v32
  %v105 = vpop.f32.mrb[0].mxu0
  %v106 = vadd.f32 %v25, %v105
  %v107 = vpop.f32.mrb[0].mxu0
  %108 = vdwg.mxu0
  %109 = vst.msk [vmem:[%s3] sm:$0xff] %vm27, %v101
  %110 = vst.msk [vmem:[%s3 + $0x8] sm:$0xff] %vm27, %v106
  // Predicated region
  $region14: #{text_attention_forward.35} parent=0 // pred_check
    _
  $region15: #{text_attention_forward.35} parent=0 // pred_check_branch
    %112 = sbr.rel (0) target = $region17
  $region16: #{text_attention_forward.35} parent=0 // pred_region
    _
  $region17: #{text_attention_forward.35} parent=0 // pred_fallthru
    _
  // Predicated region
  $region18: #{text_attention_forward.35} parent=0 // pred_check
    _
  $region19: #{text_attention_forward.35} parent=0 // pred_check_branch
    %114 = sbr.rel (0) target = $region21
  $region20: #{text_attention_forward.35} parent=0 // pred_region
    _
  $region21: #{text_attention_forward.35} parent=0 // pred_fallthru
    _

// kernel: text_attention_forward.32
$region0: #{text_attention_forward.32}
  #allocation0 [shape = 'u32[]', space=smem, size = 0x4, offset = 0x4, fixed_abs, tag = 'smem constant byte address 0x4 - core index']
  #allocation1 [shape = 'u32[144,128]{1,0:T(1,128)}', space=vmem, size = 0x12000, scoped, tag = 'internal scratch']
  %s0 = inlined_call_operand.vmem [shape: f32[16,32], index: 0, kind: input, shape index: {}]
  %s1 = inlined_call_operand.vmem [shape: f32[1,32], index: 1, kind: input, shape index: {}]
  %s2 = inlined_call_operand.vmem [shape: f32[1,32], index: 2, kind: input, shape index: {}]
  %s3 = inlined_call_operand.vmem [shape: f32[16,32], index: 3, kind: output, shape index: {}]
  %s4 = sld [smem:[#allocation0]]
  $region22: #{text_attention_forward.32} parent=0
    _
  %s6 = ssub.s32 1, %s4
  %s7 = scalar_select 0, %s6, %s4
  // Predicated region
  $region2: #{text_attention_forward.32} parent=0 // pred_check
    _
  $region3: #{text_attention_forward.32} parent=0 // pred_check_branch
    %9 = sbr.rel (0) target = $region5
  $region4: #{text_attention_forward.32} parent=0 // pred_region
    _
  $region5: #{text_attention_forward.32} parent=0 // pred_fallthru
    _
  // Predicated region
  $region6: #{text_attention_forward.32} parent=0 // pred_check
    _
  $region7: #{text_attention_forward.32} parent=0 // pred_check_branch
    %11 = sbr.rel (0) target = $region9
  $region8: #{text_attention_forward.32} parent=0 // pred_region
    _
  $region9: #{text_attention_forward.32} parent=0 // pred_fallthru
    _
  // Predicated region
  $region10: #{text_attention_forward.32} parent=0 // pred_check
    _
  $region11: #{text_attention_forward.32} parent=0 // pred_check_branch
    %13 = sbr.rel (0) target = $region13
  $region12: #{text_attention_forward.32} parent=0 // pred_region
    _
  $region13: #{text_attention_forward.32} parent=0 // pred_fallthru
    _
  %v14 = vld [vmem:[%s0] sm:$0xff]
  %v15 = vld [vmem:[%s0 + $0x8] sm:$0xff]
  %vm16 = vcmask 261120
  %v17 = vsel %vm16, %v14, 0.0
  %18 = vadd.xlane.f32.xlu0 %v17
  %v19 = vpop.xlane.xlu0 %18
  %v20 = vsel %vm16, %v15, 0.0
  %21 = vadd.xlane.f32.xlu0 %v20
  %v22 = vpop.xlane.xlu0 %21
  %v23 = vrcp.pop 32.0
  %v24 = vmul.f32 %v19, %v23
  %v25 = vmul.f32 %v22, %v23
  %v26 = vsub.f32 %v14, %v24
  %v27 = vsub.f32 %v15, %v25
  %v28 = vmul.f32 %v26, %v26
  %v29 = vmul.f32 %v27, %v27
  %v30 = vsel %vm16, %v28, 0.0
  %31 = vadd.xlane.f32.xlu0 %v30
  %v32 = vpop.xlane.xlu0 %31
  %v33 = vsel %vm16, %v29, 0.0
  %34 = vadd.xlane.f32.xlu0 %v33
  %v35 = vpop.xlane.xlu0 %34
  %v36 = vmul.f32 %v32, 0.032258064
  %v37 = vmul.f32 %v35, 0.032258064
  %v38 = vrsqrt.pop %v36
  %v39 = vmul.f32 %v36, %v38
  %vm40 = vcmp.eq.f32.partialorder %v36, inf
  %v41 = vsel %vm40, %v36, %v39
  %vm42 = vcmp.eq.f32.partialorder %v36, 0.0
  %v43 = vand.u32 %v36, 2147483648
  %v44 = vsel %vm42, %v43, %v41
  %v45 = vrsqrt.pop %v37
  %v46 = vmul.f32 %v37, %v45
  %vm47 = vcmp.eq.f32.partialorder %v37, inf
  %v48 = vsel %vm47, %v37, %v46
  %vm49 = vcmp.eq.f32.partialorder %v37, 0.0
  %v50 = vand.u32 %v37, 2147483648
  %v51 = vsel %vm49, %v50, %v48
  %v52 = vadd.f32 %v44, 1e-06
  %v53 = vadd.f32 %v51, 1e-06
  %v54 = vrcp.pop %v52
  %v55 = vrcp.pop %v53
  %v56 = vld [vmem:[%s1] sm:$0x1]
  %v57 = vld [vmem:[%s2] sm:$0x1]
  %v59 = vlaneseq
  %v60 = vshrl.u32 %v59, 7
  %v61 = vsub.s32 0, %v60
  %v62 = vrot.slane %v56, %v61
  %v64 = vmul.f32 %v62, %v54
  %v65 = vmul.f32 %v62, %v55
  %v66 = vmul.f32 %v26, %v64
  %v67 = vmul.f32 %v27, %v65
  %v69 = vlaneseq
  %v70 = vshrl.u32 %v69, 7
  %v71 = vsub.s32 0, %v70
  %v72 = vrot.slane %v57, %v71
  %v74 = vadd.f32 %v66, %v72
  %v75 = vadd.f32 %v67, %v72
  %76 = vst.msk [vmem:[%s3] sm:$0xff] %vm16, %v74
  %77 = vst.msk [vmem:[%s3 + $0x8] sm:$0xff] %vm16, %v75
  // Predicated region
  $region14: #{text_attention_forward.32} parent=0 // pred_check
    _
  $region15: #{text_attention_forward.32} parent=0 // pred_check_branch
    %79 = sbr.rel (0) target = $region17
  $region16: #{text_attention_forward.32} parent=0 // pred_region
    _
  $region17: #{text_attention_forward.32} parent=0 // pred_fallthru
    _
  // Predicated region
  $region18: #{text_attention_forward.32} parent=0 // pred_check
    _
  $region19: #{text_attention_forward.32} parent=0 // pred_check_branch
    %81 = sbr.rel (0) target = $region21
  $region20: #{text_attention_forward.32} parent=0 // pred_region
    _
  $region21: #{text_attention_forward.32} parent=0 // pred_fallthru
    _

// kernel: text_attention_forward.36
$region0: #{text_attention_forward.36}
  #allocation0 [shape = 'u32[]', space=smem, size = 0x4, offset = 0x4, fixed_abs, tag = 'smem constant byte address 0x4 - core index']
  #allocation1 [shape = 'u32[144,128]{1,0:T(1,128)}', space=vmem, size = 0x12000, scoped, tag = 'internal scratch']
  %s0 = inlined_call_operand.vmem [shape: f32[8,8,8], index: 0, kind: input, shape index: {}]
  %s1 = inlined_call_operand.vmem [shape: f32[8,8,8], index: 1, kind: input, shape index: {}]
  %s2 = inlined_call_operand.vmem [shape: f32[8,8,8], index: 2, kind: input, shape index: {}]
  %s3 = inlined_call_operand.vmem [shape: f32[8,8,8], index: 3, kind: output, shape index: {}]
  %s4 = sld [smem:[#allocation0]]
  $region45: #{text_attention_forward.36} parent=0
    _
  %s6 = ssub.s32 1, %s4
  %s7 = scalar_select 0, %s6, %s4
  loop: start=0, step=1, limit=10
  $region2: #{text_attention_forward.36} parent=0 // loop_pre_header
    _
  $region3: #{text_attention_forward.36} parent=0 // loop_header
    %s9 = sphi 0, %s13
    %p10 = scmp.ge.s32.totalorder %s9, 10
    %s19 = sphi 0, %s21
    %s22 = sphi 0, %s19
    %s23 = sphi 0, %s22
    %s39 = sphi 0, %s23
    %s45 = sphi 0, %s47
    %s48 = sphi 0, %s45
    %s49 = sphi 0, %s48
    %s65 = sphi 0, %s49
    %s71 = sphi 0, %s73
    %s74 = sphi 0, %s71
    %s75 = sphi 0, %s74
    %s91 = sphi 0, %s75
    %s97 = sphi 0, %s99
    %s100 = sphi 0, %s97
    %s101 = sphi 0, %s100
    %s117 = sphi 0, %s101
  $region4: #{text_attention_forward.36} parent=0 // loop_header_branch
    %12 = sbr.rel (%p10) target = $region8
  $region5: #{text_attention_forward.36} parent=0 // loop_body
    %s14 = ssub.s32 %s9, 1
    %s15 = ssub.s32 %s9, 2
    %s16 = sadd.s32 %s9, 1
    %s17 = ssub.s32 %s9, %s16
    %p18 = scmp.eq.s32.totalorder %s17, 0
    %s20 = sadd.s32 %s19, 1
    %s21 = scalar_select %p18, %s19, %s20
    %p24 = pneg %p18
    %p25 = scmp.eq.s32.totalorder %s9, 7
    %p26 = por %p24, %p25
    %p27 = scmp.ne.s32.totalorder %s19, %s22
    %p28 = scmp.eq.s32.totalorder %s9, 0
    %p29 = por %p27, %p28
    %p30 = scmp.ne.s32.totalorder %s19, %s22
    %p31 = scmp.eq.s32.totalorder %s14, 7
    %p32 = por %p30, %p31
    %p33 = scmp.ne.s32.totalorder %s22, %s23
    %p34 = scmp.eq.s32.totalorder %s14, 0
    %p35 = por %p33, %p34
    %p36 = scmp.ne.s32.totalorder %s22, %s23
    %p37 = scmp.eq.s32.totalorder %s15, 7
    %p38 = por %p36, %p37
    %p40 = scmp.ne.s32.totalorder %s23, %s39
    %p41 = scmp.eq.s32.totalorder %s15, 0
    %p42 = por %p40, %p41
    %s43 = ssub.s32 %s9, %s16
    %p44 = scmp.eq.s32.totalorder %s43, 0
    %s46 = sadd.s32 %s45, 1
    %s47 = scalar_select %p44, %s45, %s46
    %p50 = pneg %p44
    %p51 = scmp.eq.s32.totalorder %s9, 7
    %p52 = por %p50, %p51
    %p53 = scmp.ne.s32.totalorder %s45, %s48
    %p54 = scmp.eq.s32.totalorder %s9, 0
    %p55 = por %p53, %p54
    %p56 = scmp.ne.s32.totalorder %s45, %s48
    %p57 = scmp.eq.s32.totalorder %s14, 7
    %p58 = por %p56, %p57
    %p59 = scmp.ne.s32.totalorder %s48, %s49
    %p60 = scmp.eq.s32.totalorder %s14, 0
    %p61 = por %p59, %p60
    %p62 = scmp.ne.s32.totalorder %s48, %s49
    %p63 = scmp.eq.s32.totalorder %s15, 7
    %p64 = por %p62, %p63
    %p66 = scmp.ne.s32.totalorder %s49, %s65
    %p67 = scmp.eq.s32.totalorder %s15, 0
    %p68 = por %p66, %p67
    %s69 = ssub.s32 %s9, %s16
    %p70 = scmp.eq.s32.totalorder %s69, 0
    %s72 = sadd.s32 %s71, 1
    %s73 = scalar_select %p70, %s71, %s72
    %p76 = pneg %p70
    %p77 = scmp.eq.s32.totalorder %s9, 7
    %p78 = por %p76, %p77
    %p79 = scmp.ne.s32.totalorder %s71, %s74
    %p80 = scmp.eq.s32.totalorder %s9, 0
    %p81 = por %p79, %p80
    %p82 = scmp.ne.s32.totalorder %s71, %s74
    %p83 = scmp.eq.s32.totalorder %s14, 7
    %p84 = por %p82, %p83
    %p85 = scmp.ne.s32.totalorder %s74, %s75
    %p86 = scmp.eq.s32.totalorder %s14, 0
    %p87 = por %p85, %p86
    %p88 = scmp.ne.s32.totalorder %s74, %s75
    %p89 = scmp.eq.s32.totalorder %s15, 7
    %p90 = por %p88, %p89
    %p92 = scmp.ne.s32.totalorder %s75, %s91
    %p93 = scmp.eq.s32.totalorder %s15, 0
    %p94 = por %p92, %p93
    %s95 = ssub.s32 %s9, %s16
    %p96 = scmp.eq.s32.totalorder %s95, 0
    %s98 = sadd.s32 %s97, 1
    %s99 = scalar_select %p96, %s97, %s98
    %p102 = pneg %p96
    %p103 = scmp.eq.s32.totalorder %s9, 7
    %p104 = por %p102, %p103
    %p105 = scmp.ne.s32.totalorder %s97, %s100
    %p106 = scmp.eq.s32.totalorder %s9, 0
    %p107 = por %p105, %p106
    %p108 = scmp.ne.s32.totalorder %s97, %s100
    %p109 = scmp.eq.s32.totalorder %s14, 7
    %p110 = por %p108, %p109
    %p111 = scmp.ne.s32.totalorder %s100, %s101
    %p112 = scmp.eq.s32.totalorder %s14, 0
    %p113 = por %p111, %p112
    %p114 = scmp.ne.s32.totalorder %s100, %s101
    %p115 = scmp.eq.s32.totalorder %s15, 7
    %p116 = por %p114, %p115
    %p118 = scmp.ne.s32.totalorder %s101, %s117
    %p119 = scmp.eq.s32.totalorder %s15, 0
    %p120 = por %p118, %p119
    %p121 = scmp.le.s32.totalorder 1, %s9
    %p122 = scmp.lt.s32.totalorder %s9, 9
    %p123 = pnand %p121, %p122
    %p124 = pneg %p123
    // Predicated region
    $region9: #{text_attention_forward.36} parent=5 // pred_check
      _
    $region10: #{text_attention_forward.36} parent=5 // pred_check_branch
      %126 = sbr.rel (%p123) target = $region12
    $region11: #{text_attention_forward.36} parent=5 // pred_region
      %s127 = ssub.s32 %s9, 1
    $region12: #{text_attention_forward.36} parent=5 // pred_fallthru
      _
    %p128 = scmp.lt.s32.totalorder %s9, 8
    // Predicated region
    $region13: #{text_attention_forward.36} parent=5 // pred_check
      %p129 = pneg %p128
    $region14: #{text_attention_forward.36} parent=5 // pred_check_branch
      %131 = sbr.rel (%p129) target = $region16
    $region15: #{text_attention_forward.36} parent=5 // pred_region
      // Predicated region
      $region17: #{text_attention_forward.36} parent=15 // pred_check
        %p132 = pneg %p29
      $region18: #{text_attention_forward.36} parent=15 // pred_check_branch
        %134 = sbr.rel (%p132) target = $region20
      $region19: #{text_attention_forward.36} parent=15 // pred_region
        %p135 = scmp.lt.s32.totalorder %s9, 7
        %s136 = scalar_select %p135, %s9, 7
        %s137 = smul.addr %s136, 8
        %s138 = scalar_lea.vmem %s0, %s137
      $region20: #{text_attention_forward.36} parent=15 // pred_fallthru
        _
      // Predicated region
      $region21: #{text_attention_forward.36} parent=15 // pred_check
        %p139 = pneg %p55
      $region22: #{text_attention_forward.36} parent=15 // pred_check_branch
        %141 = sbr.rel (%p139) target = $region24
      $region23: #{text_attention_forward.36} parent=15 // pred_region
        %p142 = scmp.lt.s32.totalorder %s9, 7
        %s143 = scalar_select %p142, %s9, 7
        %s144 = smul.addr %s143, 8
        %s145 = scalar_lea.vmem %s1, %s144
      $region24: #{text_attention_forward.36} parent=15 // pred_fallthru
        _
      // Predicated region
      $region25: #{text_attention_forward.36} parent=15 // pred_check
        %p146 = pneg %p81
      $region26: #{text_attention_forward.36} parent=15 // pred_check_branch
        %148 = sbr.rel (%p146) target = $region28
      $region27: #{text_attention_forward.36} parent=15 // pred_region
        %p149 = scmp.lt.s32.totalorder %s9, 7
        %s150 = scalar_select %p149, %s9, 7
        %s151 = smul.addr %s150, 8
        %s152 = scalar_lea.vmem %s2, %s151
      $region28: #{text_attention_forward.36} parent=15 // pred_fallthru
        _
    $region16: #{text_attention_forward.36} parent=5 // pred_fallthru
      _
    %p153 = scmp.le.s32.totalorder 1, %s9
    %p154 = scmp.lt.s32.totalorder %s9, 9
    %p155 = pnand %p153, %p154
    %p156 = pneg %p155
    // Predicated region
    $region29: #{text_attention_forward.36} parent=5 // pred_check
      _
    $region30: #{text_attention_forward.36} parent=5 // pred_check_branch
      %158 = sbr.rel (%p155) target = $region32
    $region31: #{text_attention_forward.36} parent=5 // pred_region
      %s159 = ssub.s32 %s9, 1
      %p160 = scmp.lt.s32.totalorder %s14, 7
      %s161 = scalar_select %p160, %s14, 7
      %s162 = smul.addr %s161, 8
      %s163 = scalar_lea.vmem %s0, %s162
      %p164 = pneg %p35
      %p165 = pneg %p32
      %p166 = scmp.lt.s32.totalorder %s14, 7
      %s167 = scalar_select %p166, %s14, 7
      %s168 = smul.addr %s167, 8
      %s169 = scalar_lea.vmem %s1, %s168
      %p170 = pneg %p61
      %p171 = pneg %p58
      %p172 = scmp.lt.s32.totalorder %s14, 7
      %s173 = scalar_select %p172, %s14, 7
      %s174 = smul.addr %s173, 8
      %s175 = scalar_lea.vmem %s2, %s174
      %p176 = pneg %p87
      %p177 = pneg %p84
      %p178 = pneg %p113
      %p179 = pneg %p110
      %p180 = scmp.lt.s32.totalorder %s14, 7
      %s181 = scalar_select %p180, %s14, 7
      %s182 = smul.addr %s181, 8
      %s183 = scalar_lea.vmem %s3, %s182
      %p184 = scmp.lt.s32.totalorder %s14, 7
      %s185 = scalar_select %p184, %s14, 7
      %s186 = smul.addr %s185, 8
      %s187 = scalar_lea.vmem %s0, %s186
      %p188 = scmp.lt.s32.totalorder %s14, 7
      %s189 = scalar_select %p188, %s14, 7
      %s190 = smul.addr %s189, 8
      %s191 = scalar_lea.vmem %s1, %s190
      %p192 = scmp.lt.s32.totalorder %s14, 7
      %s193 = scalar_select %p192, %s14, 7
      %s194 = smul.addr %s193, 8
      %s195 = scalar_lea.vmem %s2, %s194
      %p196 = scmp.lt.s32.totalorder %s14, 7
      %s197 = scalar_select %p196, %s14, 7
      %s198 = smul.addr %s197, 8
      %s199 = scalar_lea.vmem %s3, %s198
      %v200 = vld [vmem:[%s187] sm:$0xff]
      %v201 = vld [vmem:[%s191] sm:$0xff]
      %v202 = vld [vmem:[%s195] sm:$0xff]
      %vm203 = vcmask 64512
      %v205 = vsel %vm203, %v200, 0
      %v208 = vsel %vm203, %v201, 0
      %210 = vmatprep.subr.mxu0 0.0
      %211 = vmatpush1.xpose.msra.mxu0 %v208
      %212 = vmatprep.subr.mxu0 0.0
      %213 = vmatpush1.xpose.msra.mxu0 0.0
      %214 = vmatprep.subr.mxu0 0.0
      %215 = vmatpush1.xpose.msra.mxu0 0.0
      %216 = vmatprep.subr.mxu0 0.0
      %217 = vmatpush1.xpose.msra.mxu0 0.0
      %218 = vmatprep.subr.mxu0 0.0
      %219 = vmatpush1.xpose.msra.mxu0 0.0
      %220 = vmatprep.subr.mxu0 0.0
      %221 = vmatpush1.xpose.msra.mxu0 0.0
      %222 = vmatprep.subr.mxu0 0.0
      %223 = vmatpush1.xpose.msra.mxu0 0.0
      %224 = vmatprep.subr.mxu0 0.0
      %225 = vmatpush1.xpose.msra.mxu0 0.0
      %226 = vmatprep.subr.mxu0 0.0
      %227 = vmatpush1.xpose.msra.mxu0 0.0
      %228 = vmatprep.subr.mxu0 0.0
      %229 = vmatpush1.xpose.msra.mxu0 0.0
      %230 = vmatprep.subr.mxu0 0.0
      %231 = vmatpush1.xpose.msra.mxu0 0.0
      %232 = vmatprep.subr.mxu0 0.0
      %233 = vmatpush1.xpose.msra.mxu0 0.0
      %234 = vmatprep.subr.mxu0 0.0
      %235 = vmatpush1.xpose.msra.mxu0 0.0
      %236 = vmatprep.subr.mxu0 0.0
      %237 = vmatpush1.xpose.msra.mxu0 0.0
      %238 = vmatprep.subr.mxu0 0.0
      %239 = vmatpush1.xpose.msra.mxu0 0.0
      %240 = vmatprep.subr.mxu0 0.0
      %241 = vmatpush1.xpose.msra.mxu0 0.0
      %242 = vmatprep.subr.mxu0 0.0
      %243 = vmatpush1.xpose.msra.mxu0 0.0
      %244 = vmatprep.subr.mxu0 0.0
      %245 = vmatpush1.xpose.msra.mxu0 0.0
      %246 = vmatprep.subr.mxu0 0.0
      %247 = vmatpush1.xpose.msra.mxu0 0.0
      %248 = vmatprep.subr.mxu0 0.0
      %249 = vmatpush1.xpose.msra.mxu0 0.0
      %250 = vmatprep.subr.mxu0 0.0
      %251 = vmatpush1.xpose.msra.mxu0 0.0
      %252 = vmatprep.subr.mxu0 0.0
      %253 = vmatpush1.xpose.msra.mxu0 0.0
      %254 = vmatprep.subr.mxu0 0.0
      %255 = vmatpush1.xpose.msra.mxu0 0.0
      %256 = vmatprep.subr.mxu0 0.0
      %257 = vmatpush1.xpose.msra.mxu0 0.0
      %258 = vmatprep.subr.mxu0 0.0
      %259 = vmatpush1.xpose.msra.mxu0 0.0
      %260 = vmatprep.subr.mxu0 0.0
      %261 = vmatpush1.xpose.msra.mxu0 0.0
      %262 = vmatprep.subr.mxu0 0.0
      %263 = vmatpush1.xpose.msra.mxu0 0.0
      %264 = vmatprep.subr.mxu0 0.0
      %265 = vmatpush1.xpose.msra.mxu0 0.0
      %266 = vmatprep.subr.mxu0 0.0
      %267 = vmatpush1.xpose.msra.mxu0 0.0
      %268 = vmatprep.subr.mxu0 0.0
      %269 = vmatpush1.xpose.msra.mxu0 0.0
      %270 = vmatprep.subr.mxu0 0.0
      %271 = vmatpush1.xpose.msra.mxu0 0.0
      %272 = vmatprep.subr.mxu0 0.0
      %273 = vmatpush1.xpose.msra.mxu0 0.0
      %274 = vmatprep.mubr.f32.mxu0 0.0
      %275 = vmatmul.mubr.f32.gmra.mrb[0].mxu0 %v205
      %v276 = vpop.f32.mrb[0].mxu0
      %v277 = vadd.f32 0.0, %v276
      %v278 = vpop.f32.mrb[0].mxu0
      %279 = vdwg.mxu0
      %v280 = vmul.f32 %v277, 0.35355338
      %v281 = vsel %vm203, %v280, -inf
      %282 = vmax.xlane.f32.xlu0 %v281
      %v283 = vpop.xlane.xlu0 %282
      %v284 = vsub.f32 %v280, %v283
      %v285 = vmul.f32 %v284, 1.442695
      %v286 = vpow.pop %v285
      %v287 = vsel %vm203, %v286, 0.0
      %288 = vadd.xlane.f32.xlu0 %v287
      %v289 = vpop.xlane.xlu0 %288
      %v290 = vrcp.pop %v289
      %v291 = vmul.f32 %v286, %v290
      %v293 = vsel %vm203, %v291, 0
      %295 = vmatprep.subr.mxu0 0.0
      %296 = vmatpush1.msra.mxu0 %v202
      %297 = vmatprep.subr.mxu0 0.0
      %298 = vmatpush1.msra.mxu0 0.0
      %299 = vmatprep.subr.mxu0 0.0
      %300 = vmatpush1.msra.mxu0 0.0
      %301 = vmatprep.subr.mxu0 0.0
      %302 = vmatpush1.msra.mxu0 0.0
      %303 = vmatprep.subr.mxu0 0.0
      %304 = vmatpush1.msra.mxu0 0.0
      %305 = vmatprep.subr.mxu0 0.0
      %306 = vmatpush1.msra.mxu0 0.0
      %307 = vmatprep.subr.mxu0 0.0
      %308 = vmatpush1.msra.mxu0 0.0
      %309 = vmatprep.subr.mxu0 0.0
      %310 = vmatpush1.msra.mxu0 0.0
      %311 = vmatprep.subr.mxu0 0.0
      %312 = vmatpush1.msra.mxu0 0.0
      %313 = vmatprep.subr.mxu0 0.0
      %314 = vmatpush1.msra.mxu0 0.0
      %315 = vmatprep.subr.mxu0 0.0
      %316 = vmatpush1.msra.mxu0 0.0
      %317 = vmatprep.subr.mxu0 0.0
      %318 = vmatpush1.msra.mxu0 0.0
      %319 = vmatprep.subr.mxu0 0.0
      %320 = vmatpush1.msra.mxu0 0.0
      %321 = vmatprep.subr.mxu0 0.0
      %322 = vmatpush1.msra.mxu0 0.0
      %323 = vmatprep.subr.mxu0 0.0
      %324 = vmatpush1.msra.mxu0 0.0
      %325 = vmatprep.subr.mxu0 0.0
      %326 = vmatpush1.msra.mxu0 0.0
      %327 = vmatprep.subr.mxu0 0.0
      %328 = vmatpush1.msra.mxu0 0.0
      %329 = vmatprep.subr.mxu0 0.0
      %330 = vmatpush1.msra.mxu0 0.0
      %331 = vmatprep.subr.mxu0 0.0
      %332 = vmatpush1.msra.mxu0 0.0
      %333 = vmatprep.subr.mxu0 0.0
      %334 = vmatpush1.msra.mxu0 0.0
      %335 = vmatprep.subr.mxu0 0.0
      %336 = vmatpush1.msra.mxu0 0.0
      %337 = vmatprep.subr.mxu0 0.0
      %338 = vmatpush1.msra.mxu0 0.0
      %339 = vmatprep.subr.mxu0 0.0
      %340 = vmatpush1.msra.mxu0 0.0
      %341 = vmatprep.subr.mxu0 0.0
      %342 = vmatpush1.msra.mxu0 0.0
      %343 = vmatprep.subr.mxu0 0.0
      %344 = vmatpush1.msra.mxu0 0.0
      %345 = vmatprep.subr.mxu0 0.0
      %346 = vmatpush1.msra.mxu0 0.0
      %347 = vmatprep.subr.mxu0 0.0
      %348 = vmatpush1.msra.mxu0 0.0
      %349 = vmatprep.subr.mxu0 0.0
      %350 = vmatpush1.msra.mxu0 0.0
      %351 = vmatprep.subr.mxu0 0.0
      %352 = vmatpush1.msra.mxu0 0.0
      %353 = vmatprep.subr.mxu0 0.0
      %354 = vmatpush1.msra.mxu0 0.0
      %355 = vmatprep.subr.mxu0 0.0
      %356 = vmatpush1.msra.mxu0 0.0
      %357 = vmatprep.subr.mxu0 0.0
      %358 = vmatpush1.msra.mxu0 0.0
      %359 = vmatprep.mubr.f32.mxu0 0.0
      %360 = vmatmul.mubr.f32.gmra.mrb[0].mxu0 %v293
      %v361 = vpop.f32.mrb[0].mxu0
      %v362 = vadd.f32 0.0, %v361
      %v363 = vpop.f32.mrb[0].mxu0
      %364 = vdwg.mxu0
      %365 = vst.msk [vmem:[%s199] sm:$0xff] %vm203, %v362
      %p366 = scmp.lt.s32.totalorder %s14, 7
      %s367 = scalar_select %p366, %s14, 7
      %s368 = smul.addr %s367, 8
      %s369 = scalar_lea.vmem %s3, %s368
      // Predicated region
      $region33: #{text_attention_forward.36} parent=31 // pred_check
        %p370 = pneg %p110
      $region34: #{text_attention_forward.36} parent=31 // pred_check_branch
        %372 = sbr.rel (%p370) target = $region36
      $region35: #{text_attention_forward.36} parent=31 // pred_region
        _
      $region36: #{text_attention_forward.36} parent=31 // pred_fallthru
        _
    $region32: #{text_attention_forward.36} parent=5 // pred_fallthru
      _
    %p373 = scmp.le.s32.totalorder 2, %s9
    // Predicated region
    $region37: #{text_attention_forward.36} parent=5 // pred_check
      %p374 = pneg %p373
    $region38: #{text_attention_forward.36} parent=5 // pred_check_branch
      %376 = sbr.rel (%p374) target = $region40
    $region39: #{text_attention_forward.36} parent=5 // pred_region
      %s377 = ssub.s32 %s9, 2
      // Predicated region
      $region41: #{text_attention_forward.36} parent=39 // pred_check
        %p378 = pneg %p116
      $region42: #{text_attention_forward.36} parent=39 // pred_check_branch
        %380 = sbr.rel (%p378) target = $region44
      $region43: #{text_attention_forward.36} parent=39 // pred_region
        %p381 = scmp.lt.s32.totalorder %s15, 7
        %s382 = scalar_select %p381, %s15, 7
        %s383 = smul.addr %s382, 8
        %s384 = scalar_lea.vmem %s3, %s383
      $region44: #{text_attention_forward.36} parent=39 // pred_fallthru
        _
    $region40: #{text_attention_forward.36} parent=5 // pred_fallthru
      _
  $region6: #{text_attention_forward.36} parent=0 // loop_footer
    %s13 = sadd.s32 1, %s9
  $region7: #{text_attention_forward.36} parent=0 // loop_footer_branch
    %8 = sbr.rel target = $region3
  $region8: #{text_attention_forward.36} parent=0 // loop_exit
    _

// kernel: text_attention_forward.39
$region0: #{text_attention_forward.39}
  #allocation0 [shape = 'u32[]', space=smem, size = 0x4, offset = 0x4, fixed_abs, tag = 'smem constant byte address 0x4 - core index']
  #allocation1 [shape = 'u32[144,128]{1,0:T(1,128)}', space=vmem, size = 0x12000, scoped, tag = 'internal scratch']
  %s0 = inlined_call_operand.vmem [shape: f32[16,32], index: 0, kind: input, shape index: {}]
  %s1 = inlined_call_operand.vmem [shape: f32[32,64], index: 1, kind: input, shape index: {}]
  %s2 = inlined_call_operand.vmem [shape: f32[1,64], index: 2, kind: input, shape index: {}]
  %s3 = inlined_call_operand.vmem [shape: f32[64,32], index: 3, kind: input, shape index: {}]
  %s4 = inlined_call_operand.vmem [shape: f32[1,32], index: 4, kind: input, shape index: {}]
  %s5 = inlined_call_operand.vmem [shape: f32[16,32], index: 5, kind: input, shape index: {}]
  %s6 = inlined_call_operand.vmem [shape: f32[16,32], index: 6, kind: output, shape index: {}]
  %s7 = sld [smem:[#allocation0]]
  $region34: #{text_attention_forward.39} parent=0
    _
  %s9 = ssub.s32 1, %s7
  %s10 = scalar_select 0, %s9, %s7
  // Predicated region
  $region2: #{text_attention_forward.39} parent=0 // pred_check
    _
  $region3: #{text_attention_forward.39} parent=0 // pred_check_branch
    %12 = sbr.rel (0) target = $region5
  $region4: #{text_attention_forward.39} parent=0 // pred_region
    _
  $region5: #{text_attention_forward.39} parent=0 // pred_fallthru
    _
  // Predicated region
  $region6: #{text_attention_forward.39} parent=0 // pred_check
    _
  $region7: #{text_attention_forward.39} parent=0 // pred_check_branch
    %14 = sbr.rel (0) target = $region9
  $region8: #{text_attention_forward.39} parent=0 // pred_region
    _
  $region9: #{text_attention_forward.39} parent=0 // pred_fallthru
    _
  // Predicated region
  $region10: #{text_attention_forward.39} parent=0 // pred_check
    _
  $region11: #{text_attention_forward.39} parent=0 // pred_check_branch
    %16 = sbr.rel (0) target = $region13
  $region12: #{text_attention_forward.39} parent=0 // pred_region
    _
  $region13: #{text_attention_forward.39} parent=0 // pred_fallthru
    _
  // Predicated region
  $region14: #{text_attention_forward.39} parent=0 // pred_check
    _
  $region15: #{text_attention_forward.39} parent=0 // pred_check_branch
    %18 = sbr.rel (0) target = $region17
  $region16: #{text_attention_forward.39} parent=0 // pred_region
    _
  $region17: #{text_attention_forward.39} parent=0 // pred_fallthru
    _
  // Predicated region
  $region18: #{text_attention_forward.39} parent=0 // pred_check
    _
  $region19: #{text_attention_forward.39} parent=0 // pred_check_branch
    %20 = sbr.rel (0) target = $region21
  $region20: #{text_attention_forward.39} parent=0 // pred_region
    _
  $region21: #{text_attention_forward.39} parent=0 // pred_fallthru
    _
  // Predicated region
  $region22: #{text_attention_forward.39} parent=0 // pred_check
    _
  $region23: #{text_attention_forward.39} parent=0 // pred_check_branch
    %22 = sbr.rel (0) target = $region25
  $region24: #{text_attention_forward.39} parent=0 // pred_region
    _
  $region25: #{text_attention_forward.39} parent=0 // pred_fallthru
    _
  %v23 = vld [vmem:[%s0] sm:$0xff]
  %v24 = vld [vmem:[%s0 + $0x8] sm:$0xff]
  %v25 = vld [vmem:[%s1] sm:$0xff]
  %v26 = vld [vmem:[%s1 + $0x8] sm:$0xff]
  %v27 = vld [vmem:[%s1 + $0x10] sm:$0xff]
  %v28 = vld [vmem:[%s1 + $0x18] sm:$0xff]
  %v29 = vld [vmem:[%s2] sm:$0x1]
  %v31 = vlaneseq
  %v32 = vshrl.u32 %v31, 7
  %v33 = vsub.s32 0, %v32
  %v34 = vrot.slane %v29, %v33
  %vm36 = vcmask 261120
  %v38 = vsel %vm36, %v23, 0
  %v41 = vsel %vm36, %v24, 0
  %43 = vmatprep.subr.mxu0 0.0
  %44 = vmatpush1.msra.mxu0 %v25
  %45 = vmatprep.subr.mxu0 0.0
  %46 = vmatpush1.msra.mxu0 %v26
  %47 = vmatprep.subr.mxu0 0.0
  %48 = vmatpush1.msra.mxu0 %v27
  %49 = vmatprep.subr.mxu0 0.0
  %50 = vmatpush1.msra.mxu0 %v28
  %51 = vmatprep.subr.mxu0 0.0
  %52 = vmatpush1.msra.mxu0 0.0
  %53 = vmatprep.subr.mxu0 0.0
  %54 = vmatpush1.msra.mxu0 0.0
  %55 = vmatprep.subr.mxu0 0.0
  %56 = vmatpush1.msra.mxu0 0.0
  %57 = vmatprep.subr.mxu0 0.0
  %58 = vmatpush1.msra.mxu0 0.0
  %59 = vmatprep.subr.mxu0 0.0
  %60 = vmatpush1.msra.mxu0 0.0
  %61 = vmatprep.subr.mxu0 0.0
  %62 = vmatpush1.msra.mxu0 0.0
  %63 = vmatprep.subr.mxu0 0.0
  %64 = vmatpush1.msra.mxu0 0.0
  %65 = vmatprep.subr.mxu0 0.0
  %66 = vmatpush1.msra.mxu0 0.0
  %67 = vmatprep.subr.mxu0 0.0
  %68 = vmatpush1.msra.mxu0 0.0
  %69 = vmatprep.subr.mxu0 0.0
  %70 = vmatpush1.msra.mxu0 0.0
  %71 = vmatprep.subr.mxu0 0.0
  %72 = vmatpush1.msra.mxu0 0.0
  %73 = vmatprep.subr.mxu0 0.0
  %74 = vmatpush1.msra.mxu0 0.0
  %75 = vmatprep.subr.mxu0 0.0
  %76 = vmatpush1.msra.mxu0 0.0
  %77 = vmatprep.subr.mxu0 0.0
  %78 = vmatpush1.msra.mxu0 0.0
  %79 = vmatprep.subr.mxu0 0.0
  %80 = vmatpush1.msra.mxu0 0.0
  %81 = vmatprep.subr.mxu0 0.0
  %82 = vmatpush1.msra.mxu0 0.0
  %83 = vmatprep.subr.mxu0 0.0
  %84 = vmatpush1.msra.mxu0 0.0
  %85 = vmatprep.subr.mxu0 0.0
  %86 = vmatpush1.msra.mxu0 0.0
  %87 = vmatprep.subr.mxu0 0.0
  %88 = vmatpush1.msra.mxu0 0.0
  %89 = vmatprep.subr.mxu0 0.0
  %90 = vmatpush1.msra.mxu0 0.0
  %91 = vmatprep.subr.mxu0 0.0
  %92 = vmatpush1.msra.mxu0 0.0
  %93 = vmatprep.subr.mxu0 0.0
  %94 = vmatpush1.msra.mxu0 0.0
  %95 = vmatprep.subr.mxu0 0.0
  %96 = vmatpush1.msra.mxu0 0.0
  %97 = vmatprep.subr.mxu0 0.0
  %98 = vmatpush1.msra.mxu0 0.0
  %99 = vmatprep.subr.mxu0 0.0
  %100 = vmatpush1.msra.mxu0 0.0
  %101 = vmatprep.subr.mxu0 0.0
  %102 = vmatpush1.msra.mxu0 0.0
  %103 = vmatprep.subr.mxu0 0.0
  %104 = vmatpush1.msra.mxu0 0.0
  %105 = vmatprep.subr.mxu0 0.0
  %106 = vmatpush1.msra.mxu0 0.0
  %107 = vmatprep.mubr.f32.mxu0 0.0
  %108 = vmatmul.mubr.f32.gmra.mrb[0].mxu0 %v38
  %v109 = vpop.f32.mrb[0].mxu0
  %v110 = vadd.f32 %v34, %v109
  %v111 = vpop.f32.mrb[0].mxu0
  %112 = vmatprep.mubr.f32.mxu0 0.0
  %113 = vmatmul.mubr.f32.gmra.mrb[0].mxu0 %v41
  %v114 = vpop.f32.mrb[0].mxu0
  %v115 = vadd.f32 %v34, %v114
  %v116 = vpop.f32.mrb[0].mxu0
  %117 = vdwg.mxu0
  %v118 = vmax.f32 %v110, 0.0
  %v119 = vmax.f32 %v115, 0.0
  %v120 = vld [vmem:[%s3] sm:$0xff]
  %v121 = vld [vmem:[%s3 + $0x8] sm:$0xff]
  %v122 = vld [vmem:[%s3 + $0x10] sm:$0xff]
  %v123 = vld [vmem:[%s3 + $0x18] sm:$0xff]
  %v124 = vld [vmem:[%s3 + $0x20] sm:$0xff]
  %v125 = vld [vmem:[%s3 + $0x28] sm:$0xff]
  %v126 = vld [vmem:[%s3 + $0x30] sm:$0xff]
  %v127 = vld [vmem:[%s3 + $0x38] sm:$0xff]
  %v128 = vld [vmem:[%s4] sm:$0x1]
  %v130 = vlaneseq
  %v131 = vshrl.u32 %v130, 7
  %v132 = vsub.s32 0, %v131
  %v133 = vrot.slane %v128, %v132
  %vm135 = vcmask 523264
  %v137 = vsel %vm135, %v118, 0
  %v140 = vsel %vm135, %v119, 0
  %142 = vmatprep.subr.mxu0 0.0
  %143 = vmatpush1.msra.mxu0 %v120
  %144 = vmatprep.subr.mxu0 0.0
  %145 = vmatpush1.msra.mxu0 %v121
  %146 = vmatprep.subr.mxu0 0.0
  %147 = vmatpush1.msra.mxu0 %v122
  %148 = vmatprep.subr.mxu0 0.0
  %149 = vmatpush1.msra.mxu0 %v123
  %150 = vmatprep.subr.mxu0 0.0
  %151 = vmatpush1.msra.mxu0 %v124
  %152 = vmatprep.subr.mxu0 0.0
  %153 = vmatpush1.msra.mxu0 %v125
  %154 = vmatprep.subr.mxu0 0.0
  %155 = vmatpush1.msra.mxu0 %v126
  %156 = vmatprep.subr.mxu0 0.0
  %157 = vmatpush1.msra.mxu0 %v127
  %158 = vmatprep.subr.mxu0 0.0
  %159 = vmatpush1.msra.mxu0 0.0
  %160 = vmatprep.subr.mxu0 0.0
  %161 = vmatpush1.msra.mxu0 0.0
  %162 = vmatprep.subr.mxu0 0.0
  %163 = vmatpush1.msra.mxu0 0.0
  %164 = vmatprep.subr.mxu0 0.0
  %165 = vmatpush1.msra.mxu0 0.0
  %166 = vmatprep.subr.mxu0 0.0
  %167 = vmatpush1.msra.mxu0 0.0
  %168 = vmatprep.subr.mxu0 0.0
  %169 = vmatpush1.msra.mxu0 0.0
  %170 = vmatprep.subr.mxu0 0.0
  %171 = vmatpush1.msra.mxu0 0.0
  %172 = vmatprep.subr.mxu0 0.0
  %173 = vmatpush1.msra.mxu0 0.0
  %174 = vmatprep.subr.mxu0 0.0
  %175 = vmatpush1.msra.mxu0 0.0
  %176 = vmatprep.subr.mxu0 0.0
  %177 = vmatpush1.msra.mxu0 0.0
  %178 = vmatprep.subr.mxu0 0.0
  %179 = vmatpush1.msra.mxu0 0.0
  %180 = vmatprep.subr.mxu0 0.0
  %181 = vmatpush1.msra.mxu0 0.0
  %182 = vmatprep.subr.mxu0 0.0
  %183 = vmatpush1.msra.mxu0 0.0
  %184 = vmatprep.subr.mxu0 0.0
  %185 = vmatpush1.msra.mxu0 0.0
  %186 = vmatprep.subr.mxu0 0.0
  %187 = vmatpush1.msra.mxu0 0.0
  %188 = vmatprep.subr.mxu0 0.0
  %189 = vmatpush1.msra.mxu0 0.0
  %190 = vmatprep.subr.mxu0 0.0
  %191 = vmatpush1.msra.mxu0 0.0
  %192 = vmatprep.subr.mxu0 0.0
  %193 = vmatpush1.msra.mxu0 0.0
  %194 = vmatprep.subr.mxu0 0.0
  %195 = vmatpush1.msra.mxu0 0.0
  %196 = vmatprep.subr.mxu0 0.0
  %197 = vmatpush1.msra.mxu0 0.0
  %198 = vmatprep.subr.mxu0 0.0
  %199 = vmatpush1.msra.mxu0 0.0
  %200 = vmatprep.subr.mxu0 0.0
  %201 = vmatpush1.msra.mxu0 0.0
  %202 = vmatprep.subr.mxu0 0.0
  %203 = vmatpush1.msra.mxu0 0.0
  %204 = vmatprep.subr.mxu0 0.0
  %205 = vmatpush1.msra.mxu0 0.0
  %206 = vmatprep.mubr.f32.mxu0 0.0
  %207 = vmatmul.mubr.f32.gmra.mrb[0].mxu0 %v137
  %v208 = vpop.f32.mrb[0].mxu0
  %v209 = vadd.f32 %v133, %v208
  %v210 = vpop.f32.mrb[0].mxu0
  %211 = vmatprep.mubr.f32.mxu0 0.0
  %212 = vmatmul.mubr.f32.gmra.mrb[0].mxu0 %v140
  %v213 = vpop.f32.mrb[0].mxu0
  %v214 = vadd.f32 %v133, %v213
  %v215 = vpop.f32.mrb[0].mxu0
  %216 = vdwg.mxu0
  %v217 = vld [vmem:[%s5] sm:$0xff]
  %v218 = vld [vmem:[%s5 + $0x8] sm:$0xff]
  %v219 = vadd.f32 %v209, %v217
  %v220 = vadd.f32 %v214, %v218
  %221 = vst.msk [vmem:[%s6] sm:$0xff] %vm36, %v219
  %222 = vst.msk [vmem:[%s6 + $0x8] sm:$0xff] %vm36, %v220
  // Predicated region
  $region26: #{text_attention_forward.39} parent=0 // pred_check
    _
  $region27: #{text_attention_forward.39} parent=0 // pred_check_branch
    %224 = sbr.rel (0) target = $region29
  $region28: #{text_attention_forward.39} parent=0 // pred_region
    _
  $region29: #{text_attention_forward.39} parent=0 // pred_fallthru
    _
  // Predicated region
  $region30: #{text_attention_forward.39} parent=0 // pred_check
    _
  $region31: #{text_attention_forward.39} parent=0 // pred_check_branch
    %226 = sbr.rel (0) target = $region33
  $region32: #{text_attention_forward.39} parent=0 // pred_region
    _
  $region33: #{text_attention_forward.39} parent=0 // pred_fallthru
    _

// kernel: text_attention_forward.37
$region0: #{text_attention_forward.37}
  #allocation0 [shape = 'u32[]', space=smem, size = 0x4, offset = 0x4, fixed_abs, tag = 'smem constant byte address 0x4 - core index']
  #allocation1 [shape = 'u32[144,128]{1,0:T(1,128)}', space=vmem, size = 0x12000, scoped, tag = 'internal scratch']
  %s0 = inlined_call_operand.vmem [shape: f32[16,32], index: 0, kind: input, shape index: {}]
  %s1 = inlined_call_operand.vmem [shape: f32[32,32], index: 1, kind: input, shape index: {}]
  %s2 = inlined_call_operand.vmem [shape: f32[1,32], index: 2, kind: input, shape index: {}]
  %s3 = inlined_call_operand.vmem [shape: f32[16,32], index: 3, kind: input, shape index: {}]
  %s4 = inlined_call_operand.vmem [shape: f32[16,32], index: 4, kind: output, shape index: {}]
  %s5 = sld [smem:[#allocation0]]
  $region26: #{text_attention_forward.37} parent=0
    _
  %s7 = ssub.s32 1, %s5
  %s8 = scalar_select 0, %s7, %s5
  // Predicated region
  $region2: #{text_attention_forward.37} parent=0 // pred_check
    _
  $region3: #{text_attention_forward.37} parent=0 // pred_check_branch
    %10 = sbr.rel (0) target = $region5
  $region4: #{text_attention_forward.37} parent=0 // pred_region
    _
  $region5: #{text_attention_forward.37} parent=0 // pred_fallthru
    _
  // Predicated region
  $region6: #{text_attention_forward.37} parent=0 // pred_check
    _
  $region7: #{text_attention_forward.37} parent=0 // pred_check_branch
    %12 = sbr.rel (0) target = $region9
  $region8: #{text_attention_forward.37} parent=0 // pred_region
    _
  $region9: #{text_attention_forward.37} parent=0 // pred_fallthru
    _
  // Predicated region
  $region10: #{text_attention_forward.37} parent=0 // pred_check
    _
  $region11: #{text_attention_forward.37} parent=0 // pred_check_branch
    %14 = sbr.rel (0) target = $region13
  $region12: #{text_attention_forward.37} parent=0 // pred_region
    _
  $region13: #{text_attention_forward.37} parent=0 // pred_fallthru
    _
  // Predicated region
  $region14: #{text_attention_forward.37} parent=0 // pred_check
    _
  $region15: #{text_attention_forward.37} parent=0 // pred_check_branch
    %16 = sbr.rel (0) target = $region17
  $region16: #{text_attention_forward.37} parent=0 // pred_region
    _
  $region17: #{text_attention_forward.37} parent=0 // pred_fallthru
    _
  %v17 = vld [vmem:[%s0] sm:$0xff]
  %v18 = vld [vmem:[%s0 + $0x8] sm:$0xff]
  %v19 = vld [vmem:[%s1] sm:$0xff]
  %v20 = vld [vmem:[%s1 + $0x8] sm:$0xff]
  %v21 = vld [vmem:[%s1 + $0x10] sm:$0xff]
  %v22 = vld [vmem:[%s1 + $0x18] sm:$0xff]
  %v23 = vld [vmem:[%s2] sm:$0x1]
  %v25 = vlaneseq
  %v26 = vshrl.u32 %v25, 7
  %v27 = vsub.s32 0, %v26
  %v28 = vrot.slane %v23, %v27
  %vm30 = vcmask 261120
  %v32 = vsel %vm30, %v17, 0
  %v35 = vsel %vm30, %v18, 0
  %37 = vmatprep.subr.mxu0 0.0
  %38 = vmatpush1.msra.mxu0 %v19
  %39 = vmatprep.subr.mxu0 0.0
  %40 = vmatpush1.msra.mxu0 %v20
  %41 = vmatprep.subr.mxu0 0.0
  %42 = vmatpush1.msra.mxu0 %v21
  %43 = vmatprep.subr.mxu0 0.0
  %44 = vmatpush1.msra.mxu0 %v22
  %45 = vmatprep.subr.mxu0 0.0
  %46 = vmatpush1.msra.mxu0 0.0
  %47 = vmatprep.subr.mxu0 0.0
  %48 = vmatpush1.msra.mxu0 0.0
  %49 = vmatprep.subr.mxu0 0.0
  %50 = vmatpush1.msra.mxu0 0.0
  %51 = vmatprep.subr.mxu0 0.0
  %52 = vmatpush1.msra.mxu0 0.0
  %53 = vmatprep.subr.mxu0 0.0
  %54 = vmatpush1.msra.mxu0 0.0
  %55 = vmatprep.subr.mxu0 0.0
  %56 = vmatpush1.msra.mxu0 0.0
  %57 = vmatprep.subr.mxu0 0.0
  %58 = vmatpush1.msra.mxu0 0.0
  %59 = vmatprep.subr.mxu0 0.0
  %60 = vmatpush1.msra.mxu0 0.0
  %61 = vmatprep.subr.mxu0 0.0
  %62 = vmatpush1.msra.mxu0 0.0
  %63 = vmatprep.subr.mxu0 0.0
  %64 = vmatpush1.msra.mxu0 0.0
  %65 = vmatprep.subr.mxu0 0.0
  %66 = vmatpush1.msra.mxu0 0.0
  %67 = vmatprep.subr.mxu0 0.0
  %68 = vmatpush1.msra.mxu0 0.0
  %69 = vmatprep.subr.mxu0 0.0
  %70 = vmatpush1.msra.mxu0 0.0
  %71 = vmatprep.subr.mxu0 0.0
  %72 = vmatpush1.msra.mxu0 0.0
  %73 = vmatprep.subr.mxu0 0.0
  %74 = vmatpush1.msra.mxu0 0.0
  %75 = vmatprep.subr.mxu0 0.0
  %76 = vmatpush1.msra.mxu0 0.0
  %77 = vmatprep.subr.mxu0 0.0
  %78 = vmatpush1.msra.mxu0 0.0
  %79 = vmatprep.subr.mxu0 0.0
  %80 = vmatpush1.msra.mxu0 0.0
  %81 = vmatprep.subr.mxu0 0.0
  %82 = vmatpush1.msra.mxu0 0.0
  %83 = vmatprep.subr.mxu0 0.0
  %84 = vmatpush1.msra.mxu0 0.0
  %85 = vmatprep.subr.mxu0 0.0
  %86 = vmatpush1.msra.mxu0 0.0
  %87 = vmatprep.subr.mxu0 0.0
  %88 = vmatpush1.msra.mxu0 0.0
  %89 = vmatprep.subr.mxu0 0.0
  %90 = vmatpush1.msra.mxu0 0.0
  %91 = vmatprep.subr.mxu0 0.0
  %92 = vmatpush1.msra.mxu0 0.0
  %93 = vmatprep.subr.mxu0 0.0
  %94 = vmatpush1.msra.mxu0 0.0
  %95 = vmatprep.subr.mxu0 0.0
  %96 = vmatpush1.msra.mxu0 0.0
  %97 = vmatprep.subr.mxu0 0.0
  %98 = vmatpush1.msra.mxu0 0.0
  %99 = vmatprep.subr.mxu0 0.0
  %100 = vmatpush1.msra.mxu0 0.0
  %101 = vmatprep.mubr.f32.mxu0 0.0
  %102 = vmatmul.mubr.f32.gmra.mrb[0].mxu0 %v32
  %v103 = vpop.f32.mrb[0].mxu0
  %v104 = vadd.f32 %v28, %v103
  %v105 = vpop.f32.mrb[0].mxu0
  %106 = vmatprep.mubr.f32.mxu0 0.0
  %107 = vmatmul.mubr.f32.gmra.mrb[0].mxu0 %v35
  %v108 = vpop.f32.mrb[0].mxu0
  %v109 = vadd.f32 %v28, %v108
  %v110 = vpop.f32.mrb[0].mxu0
  %111 = vdwg.mxu0
  %v112 = vld [vmem:[%s3] sm:$0xff]
  %v113 = vld [vmem:[%s3 + $0x8] sm:$0xff]
  %v114 = vadd.f32 %v104, %v112
  %v115 = vadd.f32 %v109, %v113
  %116 = vst.msk [vmem:[%s4] sm:$0xff] %vm30, %v114
  %117 = vst.msk [vmem:[%s4 + $0x8] sm:$0xff] %vm30, %v115
  // Predicated region
  $region18: #{text_attention_forward.37} parent=0 // pred_check
    _
  $region19: #{text_attention_forward.37} parent=0 // pred_check_branch
    %119 = sbr.rel (0) target = $region21
  $region20: #{text_attention_forward.37} parent=0 // pred_region
    _
  $region21: #{text_attention_forward.37} parent=0 // pred_fallthru
    _
  // Predicated region
  $region22: #{text_attention_forward.37} parent=0 // pred_check
    _
  $region23: #{text_attention_forward.37} parent=0 // pred_check_branch
    %121 = sbr.rel (0) target = $region25
  $region24: #{text_attention_forward.37} parent=0 // pred_region
    _
  $region25: #{text_attention_forward.37} parent=0 // pred_fallthru
    _

// kernel: text_attention_forward.63
$region0: #{text_attention_forward.63}
  #allocation0 [shape = 'u32[]', space=smem, size = 0x4, offset = 0x4, fixed_abs, tag = 'smem constant byte address 0x4 - core index']
  #allocation1 [shape = 'u32[144,128]{1,0:T(1,128)}', space=vmem, size = 0x12000, scoped, tag = 'internal scratch']
  %s0 = inlined_call_operand.vmem [shape: f32[16,32], index: 0, kind: input, shape index: {}]
  %s1 = inlined_call_operand.vmem [shape: f32[32,64], index: 1, kind: input, shape index: {}]
  %s2 = inlined_call_operand.vmem [shape: f32[1,64], index: 2, kind: input, shape index: {}]
  %s3 = inlined_call_operand.vmem [shape: f32[64,32], index: 3, kind: input, shape index: {}]
  %s4 = inlined_call_operand.vmem [shape: f32[1,32], index: 4, kind: input, shape index: {}]
  %s5 = inlined_call_operand.vmem [shape: f32[16,32], index: 5, kind: input, shape index: {}]
  %s6 = inlined_call_operand.hbm [shape: f32[16,32], index: 6, kind: output, shape index: {}]
  %s7 = sld [smem:[#allocation0]]
  $region34: #{text_attention_forward.63} parent=0
    _
  %s9 = ssub.s32 1, %s7
  %s10 = scalar_select 0, %s9, %s7
  $region1: #{text_attention_forward.63} parent=0
    #allocation2 [shape = 'u8[8192]{0}', space=vmem, size = 0x2000, scoped, tag = 'output window, operand 0, single buffered']
    #allocation3 [shape = 's32[1]{0}', space=sflag, size = 0x4, scoped, tag = 'scoped memory for text_attention_forward.63']
    %11 = vsyncpa [#allocation3], 0
    // Predicated region
    $region2: #{text_attention_forward.63} parent=1 // pred_check
      _
    $region3: #{text_attention_forward.63} parent=1 // pred_check_branch
      %13 = sbr.rel (0) target = $region5
    $region4: #{text_attention_forward.63} parent=1 // pred_region
      _
    $region5: #{text_attention_forward.63} parent=1 // pred_fallthru
      _
    // Predicated region
    $region6: #{text_attention_forward.63} parent=1 // pred_check
      _
    $region7: #{text_attention_forward.63} parent=1 // pred_check_branch
      %15 = sbr.rel (0) target = $region9
    $region8: #{text_attention_forward.63} parent=1 // pred_region
      _
    $region9: #{text_attention_forward.63} parent=1 // pred_fallthru
      _
    // Predicated region
    $region10: #{text_attention_forward.63} parent=1 // pred_check
      _
    $region11: #{text_attention_forward.63} parent=1 // pred_check_branch
      %17 = sbr.rel (0) target = $region13
    $region12: #{text_attention_forward.63} parent=1 // pred_region
      _
    $region13: #{text_attention_forward.63} parent=1 // pred_fallthru
      _
    // Predicated region
    $region14: #{text_attention_forward.63} parent=1 // pred_check
      _
    $region15: #{text_attention_forward.63} parent=1 // pred_check_branch
      %19 = sbr.rel (0) target = $region17
    $region16: #{text_attention_forward.63} parent=1 // pred_region
      _
    $region17: #{text_attention_forward.63} parent=1 // pred_fallthru
      _
    // Predicated region
    $region18: #{text_attention_forward.63} parent=1 // pred_check
      _
    $region19: #{text_attention_forward.63} parent=1 // pred_check_branch
      %21 = sbr.rel (0) target = $region21
    $region20: #{text_attention_forward.63} parent=1 // pred_region
      _
    $region21: #{text_attention_forward.63} parent=1 // pred_fallthru
      _
    // Predicated region
    $region22: #{text_attention_forward.63} parent=1 // pred_check
      _
    $region23: #{text_attention_forward.63} parent=1 // pred_check_branch
      %23 = sbr.rel (0) target = $region25
    $region24: #{text_attention_forward.63} parent=1 // pred_region
      _
    $region25: #{text_attention_forward.63} parent=1 // pred_fallthru
      _
    %v24 = vld [vmem:[%s0] sm:$0xff]
    %v25 = vld [vmem:[%s0 + $0x8] sm:$0xff]
    %v26 = vld [vmem:[%s1] sm:$0xff]
    %v27 = vld [vmem:[%s1 + $0x8] sm:$0xff]
    %v28 = vld [vmem:[%s1 + $0x10] sm:$0xff]
    %v29 = vld [vmem:[%s1 + $0x18] sm:$0xff]
    %v30 = vld [vmem:[%s2] sm:$0x1]
    %v32 = vlaneseq
    %v33 = vshrl.u32 %v32, 7
    %v34 = vsub.s32 0, %v33
    %v35 = vrot.slane %v30, %v34
    %vm37 = vcmask 261120
    %v39 = vsel %vm37, %v24, 0
    %v42 = vsel %vm37, %v25, 0
    %44 = vmatprep.subr.mxu0 0.0
    %45 = vmatpush1.msra.mxu0 %v26
    %46 = vmatprep.subr.mxu0 0.0
    %47 = vmatpush1.msra.mxu0 %v27
    %48 = vmatprep.subr.mxu0 0.0
    %49 = vmatpush1.msra.mxu0 %v28
    %50 = vmatprep.subr.mxu0 0.0
    %51 = vmatpush1.msra.mxu0 %v29
    %52 = vmatprep.subr.mxu0 0.0
    %53 = vmatpush1.msra.mxu0 0.0
    %54 = vmatprep.subr.mxu0 0.0
    %55 = vmatpush1.msra.mxu0 0.0
    %56 = vmatprep.subr.mxu0 0.0
    %57 = vmatpush1.msra.mxu0 0.0
    %58 = vmatprep.subr.mxu0 0.0
    %59 = vmatpush1.msra.mxu0 0.0
    %60 = vmatprep.subr.mxu0 0.0
    %61 = vmatpush1.msra.mxu0 0.0
    %62 = vmatprep.subr.mxu0 0.0
    %63 = vmatpush1.msra.mxu0 0.0
    %64 = vmatprep.subr.mxu0 0.0
    %65 = vmatpush1.msra.mxu0 0.0
    %66 = vmatprep.subr.mxu0 0.0
    %67 = vmatpush1.msra.mxu0 0.0
    %68 = vmatprep.subr.mxu0 0.0
    %69 = vmatpush1.msra.mxu0 0.0
    %70 = vmatprep.subr.mxu0 0.0
    %71 = vmatpush1.msra.mxu0 0.0
    %72 = vmatprep.subr.mxu0 0.0
    %73 = vmatpush1.msra.mxu0 0.0
    %74 = vmatprep.subr.mxu0 0.0
    %75 = vmatpush1.msra.mxu0 0.0
    %76 = vmatprep.subr.mxu0 0.0
    %77 = vmatpush1.msra.mxu0 0.0
    %78 = vmatprep.subr.mxu0 0.0
    %79 = vmatpush1.msra.mxu0 0.0
    %80 = vmatprep.subr.mxu0 0.0
    %81 = vmatpush1.msra.mxu0 0.0
    %82 = vmatprep.subr.mxu0 0.0
    %83 = vmatpush1.msra.mxu0 0.0
    %84 = vmatprep.subr.mxu0 0.0
    %85 = vmatpush1.msra.mxu0 0.0
    %86 = vmatprep.subr.mxu0 0.0
    %87 = vmatpush1.msra.mxu0 0.0
    %88 = vmatprep.subr.mxu0 0.0
    %89 = vmatpush1.msra.mxu0 0.0
    %90 = vmatprep.subr.mxu0 0.0
    %91 = vmatpush1.msra.mxu0 0.0
    %92 = vmatprep.subr.mxu0 0.0
    %93 = vmatpush1.msra.mxu0 0.0
    %94 = vmatprep.subr.mxu0 0.0
    %95 = vmatpush1.msra.mxu0 0.0
    %96 = vmatprep.subr.mxu0 0.0
    %97 = vmatpush1.msra.mxu0 0.0
    %98 = vmatprep.subr.mxu0 0.0
    %99 = vmatpush1.msra.mxu0 0.0
    %100 = vmatprep.subr.mxu0 0.0
    %101 = vmatpush1.msra.mxu0 0.0
    %102 = vmatprep.subr.mxu0 0.0
    %103 = vmatpush1.msra.mxu0 0.0
    %104 = vmatprep.subr.mxu0 0.0
    %105 = vmatpush1.msra.mxu0 0.0
    %106 = vmatprep.subr.mxu0 0.0
    %107 = vmatpush1.msra.mxu0 0.0
    %108 = vmatprep.mubr.f32.mxu0 0.0
    %109 = vmatmul.mubr.f32.gmra.mrb[0].mxu0 %v39
    %v110 = vpop.f32.mrb[0].mxu0
    %v111 = vadd.f32 %v35, %v110
    %v112 = vpop.f32.mrb[0].mxu0
    %113 = vmatprep.mubr.f32.mxu0 0.0
    %114 = vmatmul.mubr.f32.gmra.mrb[0].mxu0 %v42
    %v115 = vpop.f32.mrb[0].mxu0
    %v116 = vadd.f32 %v35, %v115
    %v117 = vpop.f32.mrb[0].mxu0
    %118 = vdwg.mxu0
    %v119 = vmax.f32 %v111, 0.0
    %v120 = vmax.f32 %v116, 0.0
    %v121 = vld [vmem:[%s3] sm:$0xff]
    %v122 = vld [vmem:[%s3 + $0x8] sm:$0xff]
    %v123 = vld [vmem:[%s3 + $0x10] sm:$0xff]
    %v124 = vld [vmem:[%s3 + $0x18] sm:$0xff]
    %v125 = vld [vmem:[%s3 + $0x20] sm:$0xff]
    %v126 = vld [vmem:[%s3 + $0x28] sm:$0xff]
    %v127 = vld [vmem:[%s3 + $0x30] sm:$0xff]
    %v128 = vld [vmem:[%s3 + $0x38] sm:$0xff]
    %v129 = vld [vmem:[%s4] sm:$0x1]
    %v131 = vlaneseq
    %v132 = vshrl.u32 %v131, 7
    %v133 = vsub.s32 0, %v132
    %v134 = vrot.slane %v129, %v133
    %vm136 = vcmask 523264
    %v138 = vsel %vm136, %v119, 0
    %v141 = vsel %vm136, %v120, 0
    %143 = vmatprep.subr.mxu0 0.0
    %144 = vmatpush1.msra.mxu0 %v121
    %145 = vmatprep.subr.mxu0 0.0
    %146 = vmatpush1.msra.mxu0 %v122
    %147 = vmatprep.subr.mxu0 0.0
    %148 = vmatpush1.msra.mxu0 %v123
    %149 = vmatprep.subr.mxu0 0.0
    %150 = vmatpush1.msra.mxu0 %v124
    %151 = vmatprep.subr.mxu0 0.0
    %152 = vmatpush1.msra.mxu0 %v125
    %153 = vmatprep.subr.mxu0 0.0
    %154 = vmatpush1.msra.mxu0 %v126
    %155 = vmatprep.subr.mxu0 0.0
    %156 = vmatpush1.msra.mxu0 %v127
    %157 = vmatprep.subr.mxu0 0.0
    %158 = vmatpush1.msra.mxu0 %v128
    %159 = vmatprep.subr.mxu0 0.0
    %160 = vmatpush1.msra.mxu0 0.0
    %161 = vmatprep.subr.mxu0 0.0
    %162 = vmatpush1.msra.mxu0 0.0
    %163 = vmatprep.subr.mxu0 0.0
    %164 = vmatpush1.msra.mxu0 0.0
    %165 = vmatprep.subr.mxu0 0.0
    %166 = vmatpush1.msra.mxu0 0.0
    %167 = vmatprep.subr.mxu0 0.0
    %168 = vmatpush1.msra.mxu0 0.0
    %169 = vmatprep.subr.mxu0 0.0
    %170 = vmatpush1.msra.mxu0 0.0
    %171 = vmatprep.subr.mxu0 0.0
    %172 = vmatpush1.msra.mxu0 0.0
    %173 = vmatprep.subr.mxu0 0.0
    %174 = vmatpush1.msra.mxu0 0.0
    %175 = vmatprep.subr.mxu0 0.0
    %176 = vmatpush1.msra.mxu0 0.0
    %177 = vmatprep.subr.mxu0 0.0
    %178 = vmatpush1.msra.mxu0 0.0
    %179 = vmatprep.subr.mxu0 0.0
    %180 = vmatpush1.msra.mxu0 0.0
    %181 = vmatprep.subr.mxu0 0.0
    %182 = vmatpush1.msra.mxu0 0.0
    %183 = vmatprep.subr.mxu0 0.0
    %184 = vmatpush1.msra.mxu0 0.0
    %185 = vmatprep.subr.mxu0 0.0
    %186 = vmatpush1.msra.mxu0 0.0
    %187 = vmatprep.subr.mxu0 0.0
    %188 = vmatpush1.msra.mxu0 0.0
    %189 = vmatprep.subr.mxu0 0.0
    %190 = vmatpush1.msra.mxu0 0.0
    %191 = vmatprep.subr.mxu0 0.0
    %192 = vmatpush1.msra.mxu0 0.0
    %193 = vmatprep.subr.mxu0 0.0
    %194 = vmatpush1.msra.mxu0 0.0
    %195 = vmatprep.subr.mxu0 0.0
    %196 = vmatpush1.msra.mxu0 0.0
    %197 = vmatprep.subr.mxu0 0.0
    %198 = vmatpush1.msra.mxu0 0.0
    %199 = vmatprep.subr.mxu0 0.0
    %200 = vmatpush1.msra.mxu0 0.0
    %201 = vmatprep.subr.mxu0 0.0
    %202 = vmatpush1.msra.mxu0 0.0
    %203 = vmatprep.subr.mxu0 0.0
    %204 = vmatpush1.msra.mxu0 0.0
    %205 = vmatprep.subr.mxu0 0.0
    %206 = vmatpush1.msra.mxu0 0.0
    %207 = vmatprep.mubr.f32.mxu0 0.0
    %208 = vmatmul.mubr.f32.gmra.mrb[0].mxu0 %v138
    %v209 = vpop.f32.mrb[0].mxu0
    %v210 = vadd.f32 %v134, %v209
    %v211 = vpop.f32.mrb[0].mxu0
    %212 = vmatprep.mubr.f32.mxu0 0.0
    %213 = vmatmul.mubr.f32.gmra.mrb[0].mxu0 %v141
    %v214 = vpop.f32.mrb[0].mxu0
    %v215 = vadd.f32 %v134, %v214
    %v216 = vpop.f32.mrb[0].mxu0
    %217 = vdwg.mxu0
    %v218 = vld [vmem:[%s5] sm:$0xff]
    %v219 = vld [vmem:[%s5 + $0x8] sm:$0xff]
    %v220 = vadd.f32 %v210, %v218
    %v221 = vadd.f32 %v215, %v219
    %222 = vst.msk [vmem:[#allocation2] sm:$0xff] %vm37, %v220
    %223 = vst.msk [vmem:[#allocation2 + $0x8] sm:$0xff] %vm37, %v221
    // Predicated region
    $region26: #{text_attention_forward.63} parent=1 // pred_check
      _
    $region27: #{text_attention_forward.63} parent=1 // pred_check_branch
      %225 = sbr.rel (0) target = $region29
    $region28: #{text_attention_forward.63} parent=1 // pred_region
      %s227 = ssub.s32 256, 256
      %228 = vsyncadd [#allocation3], %s227
      %s229 = sshll.u32 [#allocation2], 4
      %s230 = int_to_ptr.vmem [resolvable:$true] %s229
      %235 = dma.vmem_to_hbm [thread:$0]  %s230, 256, %s6, [#allocation3], 128, 128, 8
    $region29: #{text_attention_forward.63} parent=1 // pred_fallthru
      _
    // Predicated region
    $region30: #{text_attention_forward.63} parent=1 // pred_check
      _
    $region31: #{text_attention_forward.63} parent=1 // pred_check_branch
      %237 = sbr.rel (0) target = $region33
    $region32: #{text_attention_forward.63} parent=1 // pred_region
      %238 = dma.done [#allocation3], 256
    $region33: #{text_attention_forward.63} parent=1 // pred_fallthru
      _
    %239 = vsyncpa [#allocation3], 1

</llo_original>
